<compile_context>
chip_gen: v5e
topology: v5e:2x2
jax: 0.10.0
libtpu: 0.0.40
codegen_flags: <defaults>
</compile_context>

<pallas_src>
import numpy as np
import jax
import jax.numpy as jnp
from jax import lax
from jax.experimental import pallas as pl
from jax.experimental.pallas import tpu as pltpu


def _round_up(x, m):
    return ((x + m - 1) // m) * m


def _tpu_generation_info():
    """(TensorCores per chip, physical VMEM bytes per core), safe fallbacks."""
    num_tc, vmem_cap = 1, 64 * 1024 * 1024            # conservative defaults
    try:
        kind = (jax.devices()[0].device_kind or "").lower()
    except Exception:
        kind = ""
    if "v7" in kind:
        num_tc, vmem_cap = 2, 64 * 1024 * 1024        # v7x: 2 TCs, 64 MiB/TC
    elif "v5" in kind or "v6" in kind:
        num_tc, vmem_cap = 1, 128 * 1024 * 1024       # v5e/v6e: 1 TC, 128 MiB
    try:
        info = pltpu.get_tpu_info()
        vmem_cap = int(getattr(info, "vmem_capacity_bytes", vmem_cap))
    except Exception:
        pass
    return num_tc, vmem_cap


def pad_lstm_params(w_ih, w_hh, b_ih, b_hh):
    """Pre-pad LSTM weights once, gate-block-wise, into the lane-aligned
    (Hp, 4*Hp) layout consumed by lstm_forward_pallas (call-invariant)."""
    H = w_hh.shape[1]
    Hp = _round_up(H, 128)
    f32 = jnp.float32
    w_ih_t = jnp.asarray(w_ih, f32).T                 # (H, 4H)
    w_hh_t = jnp.asarray(w_hh, f32).T
    bias = jnp.asarray(b_ih, f32) + jnp.asarray(b_hh, f32)
    w_ih_tp = jnp.zeros((Hp, 4 * Hp), f32)
    w_hh_tp = jnp.zeros((Hp, 4 * Hp), f32)
    bias_p = jnp.zeros((4 * Hp,), f32)
    for k in range(4):                                # PyTorch gate order i,f,g,o
        w_ih_tp = w_ih_tp.at[:H, k * Hp:k * Hp + H].set(w_ih_t[:, k * H:(k + 1) * H])
        w_hh_tp = w_hh_tp.at[:H, k * Hp:k * Hp + H].set(w_hh_t[:, k * H:(k + 1) * H])
        bias_p = bias_p.at[k * Hp:k * Hp + H].set(bias[k * H:(k + 1) * H])
    return w_ih_tp, w_hh_tp, bias_p


def lstm_forward_pallas(emb_tbh, h0, c0, w_ih_tp, w_hh_tp, bias_p, *,
                        tt=16, use_bf16=False, matmul_precision=None):
    """emb_tbh: (T, B, H) f32 time-major embedded inputs.
    h0/c0: (B, H). w_ih_tp/w_hh_tp: (Hp, 4*Hp) gate-block padded weights
    (see pad_lstm_params); bias_p: (4*Hp,) = padded b_ih + b_hh.
    Returns (out_bth (B, T, H), h_n (B, H), c_n (B, H)).

    Note on numerics: the matmuls run at the TPU default (reduced) precision
    unless matmul_precision=jax.lax.Precision.HIGHEST is passed; the f32
    default path matches the pure-JAX reference within ~1e-4."""
    T, B, H = emb_tbh.shape
    Hp = w_hh_tp.shape[0]
    assert w_hh_tp.shape == (Hp, 4 * Hp) and Hp >= H
    f32 = jnp.float32
    gate_dtype = jnp.bfloat16 if use_bf16 else f32

    num_tc, vmem_cap = _tpu_generation_info()
    sub = 16 if use_bf16 else 8                       # sublane tile of gates_x dtype
    Bp = _round_up(B, sub)

    gx_isize = jnp.dtype(gate_dtype).itemsize
    whh_isize = gx_isize

    def chunk_vmem_bytes(tt_, tb_):
        gx = 2 * tt_ * tb_ * 4 * Hp * gx_isize        # double-buffered gates_x
        out = 2 * tb_ * tt_ * Hp * 4                  # double-buffered output slab
        whh = 2 * Hp * 4 * Hp * whh_isize             # W_hh (see Buffered(1) TODO)
        st = 2 * 4 * tb_ * Hp * 4                     # h0/c0/hn/cn blocks
        scr = (2 * tb_ + tt_ * tb_) * Hp * 4          # h/c state + chunk output
        return gx + out + whh + st + scr

    budget = int(0.8 * vmem_cap)

    # ---- batch tile: split across TensorCores only when there are >1 and the
    # per-core batch is big enough that the h @ W_hh matmul actually scales.
    TB = Bp
    core_split = False
    if num_tc >= 2 and Bp % (2 * sub) == 0 and Bp // 2 >= 64:
        TB = Bp // 2
        core_split = True

    # ---- time tile: biggest chunk that fits VMEM; prefer divisors of T so no
    # per-step masking is needed.  (Out block is batch-major (TB, TT, Hp), so
    # TT must be a multiple of 8 or equal to the padded time extent.)
    def pick_time_tile(tb_):
        tt_req = max(1, min(tt, T))
        if T <= tt_req and chunk_vmem_bytes(T, tb_) <= budget:
            return T, T                               # one chunk covers the sequence
        cap = max(8, (min(tt_req, T) // 8) * 8)
        while cap > 8 and chunk_vmem_bytes(cap, tb_) > budget:
            cap -= 8
        for cand in range(cap, 7, -8):                # prefer a divisor of T
            if T % cand == 0:
                return cand, T
        return cap, _round_up(T, cap)

    while True:
        TT, Tp = pick_time_tile(TB)
        if chunk_vmem_bytes(TT, TB) <= budget or TB <= sub or TB % (2 * sub) != 0:
            break
        TB //= 2                                      # last resort: tile the batch
    n_time_chunks = Tp // TT
    n_btiles = Bp // TB
    needs_mask = Tp != T

    # ---- pad activations (zero padding keeps padded lanes exactly zero) -----
    emb_p = jnp.zeros((Tp, Bp, Hp), f32).at[:T, :B, :H].set(emb_tbh.astype(f32))
    h0_p = jnp.zeros((Bp, Hp), f32).at[:B, :H].set(h0.astype(f32))
    c0_p = jnp.zeros((Bp, Hp), f32).at[:B, :H].set(c0.astype(f32))

    # ---- hoisted, fully parallel input projection (one big matmul) ----------
    gates_x = jnp.einsum('tbh,hg->tbg', emb_p, w_ih_tp,
                         preferred_element_type=f32,
                         precision=matmul_precision) + bias_p     # (Tp, Bp, 4Hp)
    gates_x = gates_x.astype(gate_dtype)              # bf16 halves the HBM stream
    w_hh_use = w_hh_tp.astype(gate_dtype)

    # ---- Pallas recurrence kernel -------------------------------------------
    def kernel(gx_ref, h0_ref, c0_ref, whh_ref, out_ref, hn_ref, cn_ref,
               h_scr, c_scr, o_scr):
        t_chunk = pl.program_id(1)

        @pl.when(t_chunk == 0)
        def _():
            h_scr[...] = h0_ref[...]
            c_scr[...] = c0_ref[...]

        whh = whh_ref[...]                    # hoist weight load out of the loop
        # TODO(synk): weight-stationary MXU (push W_hh once per chunk).

        def step(i, carry):
            h, c = carry
            gates = gx_ref[i].astype(jnp.float32) + jnp.dot(
                h.astype(whh.dtype), whh,
                preferred_element_type=jnp.float32,
                precision=matmul_precision)
            i_g = jax.nn.sigmoid(gates[:, 0 * Hp:1 * Hp])
            f_g = jax.nn.sigmoid(gates[:, 1 * Hp:2 * Hp])
            g_g = jnp.tanh(gates[:, 2 * Hp:3 * Hp])
            o_g = jax.nn.sigmoid(gates[:, 3 * Hp:4 * Hp])
            c_new = f_g * c + i_g * g_g
            h_new = o_g * jnp.tanh(c_new)
            o_scr[i] = h_new                  # dense (TB, Hp) store, time-major
            if needs_mask:                    # ignore padded timesteps in carry
                keep = (t_chunk * TT + i) < T
                h_new = jnp.where(keep, h_new, h)
                c_new = jnp.where(keep, c_new, c)
            return (h_new, c_new)

        # fori_loop(unroll=True) keeps LLO scheduling visibility while bounding
        # the live ranges of the per-step (TB, 4*Hp) gate temporaries.
        h, c = lax.fori_loop(0, TT, step, (h_scr[...], c_scr[...]), unroll=True)
        h_scr[...] = h
        c_scr[...] = c

        # Chunk epilogue: VMEM-local time-major -> batch-major copy (static
        # sublane indices only).  Writing batch-major output directly saves the
        # full HBM round-trip a wrapper-side transpose would cost.
        for j in range(TT):
            out_ref[:, j, :] = o_scr[j].astype(out_ref.dtype)

        @pl.when(t_chunk == pl.num_programs(1) - 1)
        def _():
            hn_ref[...] = h.astype(hn_ref.dtype)
            cn_ref[...] = c.astype(cn_ref.dtype)

    # ---- per-generation grid semantics / VMEM limit / cost hint -------------
    if core_split and n_btiles == num_tc:
        dim_sem = (pltpu.CORE_PARALLEL, pltpu.ARBITRARY)
    elif n_btiles > 1:
        dim_sem = ("parallel", "arbitrary")
    else:
        dim_sem = ("arbitrary", "arbitrary")          # time stays innermost

    need = chunk_vmem_bytes(TT, TB)
    vmem_limit = max(int(need * 1.25) + (2 << 20), 32 << 20)
    vmem_limit = int(min(vmem_limit, vmem_cap - (4 << 20)))

    flops = 2 * Tp * Bp * Hp * (4 * Hp) + 10 * Tp * Bp * Hp
    transcendentals = 5 * Tp * Bp * Hp
    bytes_accessed = (Tp * Bp * 4 * Hp * gx_isize     # gates_x stream
                      + Hp * 4 * Hp * whh_isize       # W_hh
                      + Bp * Tp * Hp * 4              # output sequence
                      + 4 * Bp * Hp * 4)              # h0/c0/hn/cn

    out, hn, cn_out = pl.pallas_call(
        kernel,
        out_shape=(
            jax.ShapeDtypeStruct((Bp, Tp, Hp), f32),  # batch-major sequence
            jax.ShapeDtypeStruct((Bp, Hp), f32),
            jax.ShapeDtypeStruct((Bp, Hp), f32),
        ),
        grid_spec=pltpu.PrefetchScalarGridSpec(
            num_scalar_prefetch=0,
            grid=(n_btiles, n_time_chunks),
            in_specs=[
                pl.BlockSpec((TT, TB, 4 * Hp), lambda b, t: (t, b, 0)),  # gates_x
                pl.BlockSpec((TB, Hp), lambda b, t: (b, 0)),             # h0
                pl.BlockSpec((TB, Hp), lambda b, t: (b, 0)),             # c0
                pl.BlockSpec((Hp, 4 * Hp), lambda b, t: (0, 0)),         # W_hh^T
            ],
            out_specs=[
                pl.BlockSpec((TB, TT, Hp), lambda b, t: (b, t, 0)),      # out seq
                pl.BlockSpec((TB, Hp), lambda b, t: (b, 0)),             # h_n
                pl.BlockSpec((TB, Hp), lambda b, t: (b, 0)),             # c_n
            ],
            scratch_shapes=[
                pltpu.VMEM((TB, Hp), f32),            # h state (carried over time)
                pltpu.VMEM((TB, Hp), f32),            # c state
                pltpu.VMEM((TT, TB, Hp), f32),        # per-chunk outputs
            ],
        ),
        compiler_params=pltpu.CompilerParams(
            dimension_semantics=dim_sem,
            vmem_limit_bytes=vmem_limit),
        cost_estimate=pl.CostEstimate(
            flops=int(flops), transcendentals=int(transcendentals),
            bytes_accessed=int(bytes_accessed)),
    )(gates_x, h0_p, c0_p, w_hh_use)

    return out[:B, :T, :H], hn[:B, :H], cn_out[:B, :H]


class EncoderRNNPallas:
    """JAX/Pallas re-implementation of the PyTorch EncoderRNN forward."""

    def __init__(self, input_size, hidden_size, key, *, use_bf16=False):
        self.hidden_size = hidden_size
        self.use_bf16 = use_bf16
        ks = jax.random.split(key, 5)
        H = hidden_size
        # nn.Embedding default init: N(0, 1)
        self.embedding = jax.random.normal(ks[0], (input_size, H), jnp.float32)
        # nn.LSTM default init: U(-1/sqrt(H), 1/sqrt(H))
        bound = 1.0 / np.sqrt(H)
        self.w_ih = jax.random.uniform(ks[1], (4 * H, H), jnp.float32, -bound, bound)
        self.w_hh = jax.random.uniform(ks[2], (4 * H, H), jnp.float32, -bound, bound)
        self.b_ih = jax.random.uniform(ks[3], (4 * H,), jnp.float32, -bound, bound)
        self.b_hh = jax.random.uniform(ks[4], (4 * H,), jnp.float32, -bound, bound)
        # call-invariant gate-block-padded parameters, built once and cached
        self.w_ih_tp, self.w_hh_tp, self.bias_p = pad_lstm_params(
            self.w_ih, self.w_hh, self.b_ih, self.b_hh)

    def init_hidden(self, batch_size):
        h = jnp.zeros((1, batch_size, self.hidden_size), jnp.float32)
        c = jnp.zeros((1, batch_size, self.hidden_size), jnp.float32)
        return h, c

    def forward(self, inputs, hidden, cn):
        # inputs: (B, T) integer token ids; hidden/cn: (1, B, H)
        inputs = inputs.astype(jnp.int32)
        # gather directly time-major (T, B, H) — avoids an extra HBM transpose
        emb_tbh = jnp.take(self.embedding, inputs.T, axis=0)
        out_bth, hn, cn_out = lstm_forward_pallas(
            emb_tbh, hidden[0], cn[0],
            self.w_ih_tp, self.w_hh_tp, self.bias_p,
            use_bf16=self.use_bf16)
        return out_bth, hn[None, :, :], cn_out[None, :, :]


def _reference_forward(model, inputs, hidden, cn):
    """Pure-JAX reference LSTM for correctness checking."""
    H = model.hidden_size
    embedded = jnp.take(model.embedding, inputs.astype(jnp.int32), axis=0)  # (B,T,H)
    bias = model.b_ih + model.b_hh

    def step(carry, x_t):
        h, c = carry
        gates = x_t @ model.w_ih.T + h @ model.w_hh.T + bias
        i = jax.nn.sigmoid(gates[:, 0:H])
        f = jax.nn.sigmoid(gates[:, H:2 * H])
        g = jnp.tanh(gates[:, 2 * H:3 * H])
        o = jax.nn.sigmoid(gates[:, 3 * H:4 * H])
        c_new = f * c + i * g
        h_new = o * jnp.tanh(c_new)
        return (h_new, c_new), h_new

    (hn, cn_out), out_tbh = jax.lax.scan(
        step, (hidden[0], cn[0]), jnp.transpose(embedded, (1, 0, 2)))
    return jnp.transpose(out_tbh, (1, 0, 2)), hn[None], cn_out[None]


if __name__ == "__main__":
    B, T, H, VOCAB = 2, 8, 32, 16

    key = jax.random.PRNGKey(0)
    k_param, k_inp = jax.random.split(key)

    model = EncoderRNNPallas(VOCAB, H, k_param)
    inputs = jax.random.randint(k_inp, (B, T), 0, VOCAB, dtype=jnp.int32)
    hidden, cn = model.init_hidden(B)

    output, h_n, c_n = model.forward(inputs, hidden, cn)
    jax.block_until_ready((output, h_n, c_n))

    # sanity check against pure-JAX reference
    ref_out, ref_h, ref_c = _reference_forward(model, inputs, hidden, cn)
    np.testing.assert_allclose(np.asarray(output), np.asarray(ref_out), rtol=1e-4, atol=1e-4)
    np.testing.assert_allclose(np.asarray(h_n), np.asarray(ref_h), rtol=1e-4, atol=1e-4)
    np.testing.assert_allclose(np.asarray(c_n), np.asarray(ref_c), rtol=1e-4, atol=1e-4)

    assert output.shape == (B, T, H) and h_n.shape == (1, B, H) and c_n.shape == (1, B, H)
    print("KERNEL_OK")
</pallas_src>

<mosaic_0001>
module attributes {stable_mosaic.version = 11 : i64} {
  func.func @kernel(%arg0: i32, %arg1: i32, %arg2: memref<8x8x512xf32, #tpu.memory_space<vmem>>, %arg3: memref<8x128xf32, #tpu.memory_space<vmem>>, %arg4: memref<8x128xf32, #tpu.memory_space<vmem>>, %arg5: memref<128x512xf32, #tpu.memory_space<vmem>>, %arg6: memref<8x8x128xf32, #tpu.memory_space<vmem>>, %arg7: memref<8x128xf32, #tpu.memory_space<vmem>>, %arg8: memref<8x128xf32, #tpu.memory_space<vmem>>, %arg9: memref<8x128xf32, #tpu.memory_space<vmem>>, %arg10: memref<8x128xf32, #tpu.memory_space<vmem>>, %arg11: memref<8x8x128xf32, #tpu.memory_space<vmem>>) attributes {dimension_semantics = [#tpu.dimension_semantics<arbitrary>, #tpu.dimension_semantics<arbitrary>], iteration_bounds = array<i64: 1, 1>, scalar_prefetch = 0 : i64, scratch_operands = 3 : i64, tpu.core_type = #tpu.core_type<tc>, window_params = [{transform_indices = @transform_0, window_bounds = array<i64: 8, 8, 512>}, {transform_indices = @transform_1, window_bounds = array<i64: 8, 128>}, {transform_indices = @transform_2, window_bounds = array<i64: 8, 128>}, {pipeline_mode = #tpu.pipeline_mode<synchronous>, transform_indices = @transform_3, window_bounds = array<i64: 128, 512>}, {transform_indices = @transform_4, window_bounds = array<i64: 8, 8, 128>}, {transform_indices = @transform_5, window_bounds = array<i64: 8, 128>}, {transform_indices = @transform_6, window_bounds = array<i64: 8, 128>}]} {
    %c0_i32 = arith.constant 0 : i32
    %0 = arith.cmpi eq, %arg1, %c0_i32 : i32
    %1 = arith.extui %0 : i1 to i32
    %c0_i32_0 = arith.constant 0 : i32
    %2 = arith.cmpi ne, %1, %c0_i32_0 : i32
    scf.if %2 {
      %c0_117 = arith.constant 0 : index
      %c0_118 = arith.constant 0 : index
      %323 = vector.load %arg3[%c0_117, %c0_118] : memref<8x128xf32, #tpu.memory_space<vmem>>, vector<8x128xf32>
      %c0_119 = arith.constant 0 : index
      %c0_120 = arith.constant 0 : index
      %324 = vector.load %arg9[%c0_119, %c0_120] : memref<8x128xf32, #tpu.memory_space<vmem>>, vector<8x128xf32>
      tpu.vector_store %arg9[%c0_119, %c0_120], %323 {strides = array<i32>} : memref<8x128xf32, #tpu.memory_space<vmem>>, vector<8x128xf32>,
      %c0_121 = arith.constant 0 : index
      %c0_122 = arith.constant 0 : index
      %325 = vector.load %arg4[%c0_121, %c0_122] : memref<8x128xf32, #tpu.memory_space<vmem>>, vector<8x128xf32>
      %c0_123 = arith.constant 0 : index
      %c0_124 = arith.constant 0 : index
      %326 = vector.load %arg10[%c0_123, %c0_124] : memref<8x128xf32, #tpu.memory_space<vmem>>, vector<8x128xf32>
      tpu.vector_store %arg10[%c0_123, %c0_124], %325 {strides = array<i32>} : memref<8x128xf32, #tpu.memory_space<vmem>>, vector<8x128xf32>,
    } else {
    }
    %c0 = arith.constant 0 : index
    %c0_1 = arith.constant 0 : index
    %3 = vector.load %arg5[%c0, %c0_1] : memref<128x512xf32, #tpu.memory_space<vmem>>, vector<128x512xf32>
    %c0_2 = arith.constant 0 : index
    %c0_3 = arith.constant 0 : index
    %4 = vector.load %arg9[%c0_2, %c0_3] : memref<8x128xf32, #tpu.memory_space<vmem>>, vector<8x128xf32>
    %c0_4 = arith.constant 0 : index
    %c0_5 = arith.constant 0 : index
    %5 = vector.load %arg10[%c0_4, %c0_5] : memref<8x128xf32, #tpu.memory_space<vmem>>, vector<8x128xf32>
    %c0_i32_6 = arith.constant 0 : i32
    %6 = arith.index_cast %c0_i32_6 : i32 to index
    %c0_7 = arith.constant 0 : index
    %c0_8 = arith.constant 0 : index
    %7 = vector.load %arg2[%6, %c0_7, %c0_8] : memref<8x8x512xf32, #tpu.memory_space<vmem>>, vector<1x8x512xf32>
    %8 = vector.shape_cast %7 : vector<1x8x512xf32> to vector<8x512xf32>
    %cst = arith.constant dense<0.000000e+00> : vector<8x512xf32>
    %9 = tpu.matmul %4, %3, %cst {dimension_numbers = #tpu.dot_dimension_numbers<[1], [0], [0], [1], [0, 0, 1, 1], [], []>} : vector<8x128xf32>, vector<128x512xf32>, vector<8x512xf32> -> vector<8x512xf32>
    %10 = arith.addf %8, %9 : vector<8x512xf32>
    %11 = vector.extract_strided_slice %10 {offsets = [0, 0], sizes = [8, 128], strides = [1, 1]} : vector<8x512xf32> to vector<8x128xf32>
    %12 = arith.negf %11 : vector<8x128xf32>
    %13 = math.exp %12 : vector<8x128xf32>
    %cst_9 = arith.constant 1.000000e+00 : f32
    %14 = vector.broadcast %cst_9 : f32 to vector<8x128xf32>
    %15 = arith.addf %14, %13 : vector<8x128xf32>
    %16 = arith.divf %14, %15 : vector<8x128xf32>
    %17 = vector.extract_strided_slice %10 {offsets = [0, 128], sizes = [8, 128], strides = [1, 1]} : vector<8x512xf32> to vector<8x128xf32>
    %18 = arith.negf %17 : vector<8x128xf32>
    %19 = math.exp %18 : vector<8x128xf32>
    %cst_10 = arith.constant 1.000000e+00 : f32
    %20 = vector.broadcast %cst_10 : f32 to vector<8x128xf32>
    %21 = arith.addf %20, %19 : vector<8x128xf32>
    %22 = arith.divf %20, %21 : vector<8x128xf32>
    %23 = vector.extract_strided_slice %10 {offsets = [0, 256], sizes = [8, 128], strides = [1, 1]} : vector<8x512xf32> to vector<8x128xf32>
    %24 = math.tanh %23 : vector<8x128xf32>
    %25 = vector.extract_strided_slice %10 {offsets = [0, 384], sizes = [8, 128], strides = [1, 1]} : vector<8x512xf32> to vector<8x128xf32>
    %26 = arith.negf %25 : vector<8x128xf32>
    %27 = math.exp %26 : vector<8x128xf32>
    %cst_11 = arith.constant 1.000000e+00 : f32
    %28 = vector.broadcast %cst_11 : f32 to vector<8x128xf32>
    %29 = arith.addf %28, %27 : vector<8x128xf32>
    %30 = arith.divf %28, %29 : vector<8x128xf32>
    %31 = arith.mulf %22, %5 : vector<8x128xf32>
    %32 = arith.mulf %16, %24 : vector<8x128xf32>
    %33 = arith.addf %31, %32 : vector<8x128xf32>
    %34 = math.tanh %33 : vector<8x128xf32>
    %35 = arith.mulf %30, %34 : vector<8x128xf32>
    %36 = arith.index_cast %c0_i32_6 : i32 to index
    %c0_12 = arith.constant 0 : index
    %c0_13 = arith.constant 0 : index
    %37 = vector.load %arg11[%36, %c0_12, %c0_13] : memref<8x8x128xf32, #tpu.memory_space<vmem>>, vector<1x8x128xf32>
    %38 = vector.shape_cast %37 : vector<1x8x128xf32> to vector<8x128xf32>
    %39 = vector.shape_cast %35 : vector<8x128xf32> to vector<1x8x128xf32>
    tpu.vector_store %arg11[%36, %c0_12, %c0_13], %39 {strides = array<i32>} : memref<8x8x128xf32, #tpu.memory_space<vmem>>, vector<1x8x128xf32>,
    %c1_i32 = arith.constant 1 : i32
    %40 = arith.index_cast %c1_i32 : i32 to index
    %c0_14 = arith.constant 0 : index
    %c0_15 = arith.constant 0 : index
    %41 = vector.load %arg2[%40, %c0_14, %c0_15] : memref<8x8x512xf32, #tpu.memory_space<vmem>>, vector<1x8x512xf32>
    %42 = vector.shape_cast %41 : vector<1x8x512xf32> to vector<8x512xf32>
    %cst_16 = arith.constant dense<0.000000e+00> : vector<8x512xf32>
    %43 = tpu.matmul %35, %3, %cst_16 {dimension_numbers = #tpu.dot_dimension_numbers<[1], [0], [0], [1], [0, 0, 1, 1], [], []>} : vector<8x128xf32>, vector<128x512xf32>, vector<8x512xf32> -> vector<8x512xf32>
    %44 = arith.addf %42, %43 : vector<8x512xf32>
    %45 = vector.extract_strided_slice %44 {offsets = [0, 0], sizes = [8, 128], strides = [1, 1]} : vector<8x512xf32> to vector<8x128xf32>
    %46 = arith.negf %45 : vector<8x128xf32>
    %47 = math.exp %46 : vector<8x128xf32>
    %cst_17 = arith.constant 1.000000e+00 : f32
    %48 = vector.broadcast %cst_17 : f32 to vector<8x128xf32>
    %49 = arith.addf %48, %47 : vector<8x128xf32>
    %50 = arith.divf %48, %49 : vector<8x128xf32>
    %51 = vector.extract_strided_slice %44 {offsets = [0, 128], sizes = [8, 128], strides = [1, 1]} : vector<8x512xf32> to vector<8x128xf32>
    %52 = arith.negf %51 : vector<8x128xf32>
    %53 = math.exp %52 : vector<8x128xf32>
    %cst_18 = arith.constant 1.000000e+00 : f32
    %54 = vector.broadcast %cst_18 : f32 to vector<8x128xf32>
    %55 = arith.addf %54, %53 : vector<8x128xf32>
    %56 = arith.divf %54, %55 : vector<8x128xf32>
    %57 = vector.extract_strided_slice %44 {offsets = [0, 256], sizes = [8, 128], strides = [1, 1]} : vector<8x512xf32> to vector<8x128xf32>
    %58 = math.tanh %57 : vector<8x128xf32>
    %59 = vector.extract_strided_slice %44 {offsets = [0, 384], sizes = [8, 128], strides = [1, 1]} : vector<8x512xf32> to vector<8x128xf32>
    %60 = arith.negf %59 : vector<8x128xf32>
    %61 = math.exp %60 : vector<8x128xf32>
    %cst_19 = arith.constant 1.000000e+00 : f32
    %62 = vector.broadcast %cst_19 : f32 to vector<8x128xf32>
    %63 = arith.addf %62, %61 : vector<8x128xf32>
    %64 = arith.divf %62, %63 : vector<8x128xf32>
    %65 = arith.mulf %56, %33 : vector<8x128xf32>
    %66 = arith.mulf %50, %58 : vector<8x128xf32>
    %67 = arith.addf %65, %66 : vector<8x128xf32>
    %68 = math.tanh %67 : vector<8x128xf32>
    %69 = arith.mulf %64, %68 : vector<8x128xf32>
    %70 = arith.index_cast %c1_i32 : i32 to index
    %c0_20 = arith.constant 0 : index
    %c0_21 = arith.constant 0 : index
    %71 = vector.load %arg11[%70, %c0_20, %c0_21] : memref<8x8x128xf32, #tpu.memory_space<vmem>>, vector<1x8x128xf32>
    %72 = vector.shape_cast %71 : vector<1x8x128xf32> to vector<8x128xf32>
    %73 = vector.shape_cast %69 : vector<8x128xf32> to vector<1x8x128xf32>
    tpu.vector_store %arg11[%70, %c0_20, %c0_21], %73 {strides = array<i32>} : memref<8x8x128xf32, #tpu.memory_space<vmem>>, vector<1x8x128xf32>,
    %c2_i32 = arith.constant 2 : i32
    %74 = arith.index_cast %c2_i32 : i32 to index
    %c0_22 = arith.constant 0 : index
    %c0_23 = arith.constant 0 : index
    %75 = vector.load %arg2[%74, %c0_22, %c0_23] : memref<8x8x512xf32, #tpu.memory_space<vmem>>, vector<1x8x512xf32>
    %76 = vector.shape_cast %75 : vector<1x8x512xf32> to vector<8x512xf32>
    %cst_24 = arith.constant dense<0.000000e+00> : vector<8x512xf32>
    %77 = tpu.matmul %69, %3, %cst_24 {dimension_numbers = #tpu.dot_dimension_numbers<[1], [0], [0], [1], [0, 0, 1, 1], [], []>} : vector<8x128xf32>, vector<128x512xf32>, vector<8x512xf32> -> vector<8x512xf32>
    %78 = arith.addf %76, %77 : vector<8x512xf32>
    %79 = vector.extract_strided_slice %78 {offsets = [0, 0], sizes = [8, 128], strides = [1, 1]} : vector<8x512xf32> to vector<8x128xf32>
    %80 = arith.negf %79 : vector<8x128xf32>
    %81 = math.exp %80 : vector<8x128xf32>
    %cst_25 = arith.constant 1.000000e+00 : f32
    %82 = vector.broadcast %cst_25 : f32 to vector<8x128xf32>
    %83 = arith.addf %82, %81 : vector<8x128xf32>
    %84 = arith.divf %82, %83 : vector<8x128xf32>
    %85 = vector.extract_strided_slice %78 {offsets = [0, 128], sizes = [8, 128], strides = [1, 1]} : vector<8x512xf32> to vector<8x128xf32>
    %86 = arith.negf %85 : vector<8x128xf32>
    %87 = math.exp %86 : vector<8x128xf32>
    %cst_26 = arith.constant 1.000000e+00 : f32
    %88 = vector.broadcast %cst_26 : f32 to vector<8x128xf32>
    %89 = arith.addf %88, %87 : vector<8x128xf32>
    %90 = arith.divf %88, %89 : vector<8x128xf32>
    %91 = vector.extract_strided_slice %78 {offsets = [0, 256], sizes = [8, 128], strides = [1, 1]} : vector<8x512xf32> to vector<8x128xf32>
    %92 = math.tanh %91 : vector<8x128xf32>
    %93 = vector.extract_strided_slice %78 {offsets = [0, 384], sizes = [8, 128], strides = [1, 1]} : vector<8x512xf32> to vector<8x128xf32>
    %94 = arith.negf %93 : vector<8x128xf32>
    %95 = math.exp %94 : vector<8x128xf32>
    %cst_27 = arith.constant 1.000000e+00 : f32
    %96 = vector.broadcast %cst_27 : f32 to vector<8x128xf32>
    %97 = arith.addf %96, %95 : vector<8x128xf32>
    %98 = arith.divf %96, %97 : vector<8x128xf32>
    %99 = arith.mulf %90, %67 : vector<8x128xf32>
    %100 = arith.mulf %84, %92 : vector<8x128xf32>
    %101 = arith.addf %99, %100 : vector<8x128xf32>
    %102 = math.tanh %101 : vector<8x128xf32>
    %103 = arith.mulf %98, %102 : vector<8x128xf32>
    %104 = arith.index_cast %c2_i32 : i32 to index
    %c0_28 = arith.constant 0 : index
    %c0_29 = arith.constant 0 : index
    %105 = vector.load %arg11[%104, %c0_28, %c0_29] : memref<8x8x128xf32, #tpu.memory_space<vmem>>, vector<1x8x128xf32>
    %106 = vector.shape_cast %105 : vector<1x8x128xf32> to vector<8x128xf32>
    %107 = vector.shape_cast %103 : vector<8x128xf32> to vector<1x8x128xf32>
    tpu.vector_store %arg11[%104, %c0_28, %c0_29], %107 {strides = array<i32>} : memref<8x8x128xf32, #tpu.memory_space<vmem>>, vector<1x8x128xf32>,
    %c3_i32 = arith.constant 3 : i32
    %108 = arith.index_cast %c3_i32 : i32 to index
    %c0_30 = arith.constant 0 : index
    %c0_31 = arith.constant 0 : index
    %109 = vector.load %arg2[%108, %c0_30, %c0_31] : memref<8x8x512xf32, #tpu.memory_space<vmem>>, vector<1x8x512xf32>
    %110 = vector.shape_cast %109 : vector<1x8x512xf32> to vector<8x512xf32>
    %cst_32 = arith.constant dense<0.000000e+00> : vector<8x512xf32>
    %111 = tpu.matmul %103, %3, %cst_32 {dimension_numbers = #tpu.dot_dimension_numbers<[1], [0], [0], [1], [0, 0, 1, 1], [], []>} : vector<8x128xf32>, vector<128x512xf32>, vector<8x512xf32> -> vector<8x512xf32>
    %112 = arith.addf %110, %111 : vector<8x512xf32>
    %113 = vector.extract_strided_slice %112 {offsets = [0, 0], sizes = [8, 128], strides = [1, 1]} : vector<8x512xf32> to vector<8x128xf32>
    %114 = arith.negf %113 : vector<8x128xf32>
    %115 = math.exp %114 : vector<8x128xf32>
    %cst_33 = arith.constant 1.000000e+00 : f32
    %116 = vector.broadcast %cst_33 : f32 to vector<8x128xf32>
    %117 = arith.addf %116, %115 : vector<8x128xf32>
    %118 = arith.divf %116, %117 : vector<8x128xf32>
    %119 = vector.extract_strided_slice %112 {offsets = [0, 128], sizes = [8, 128], strides = [1, 1]} : vector<8x512xf32> to vector<8x128xf32>
    %120 = arith.negf %119 : vector<8x128xf32>
    %121 = math.exp %120 : vector<8x128xf32>
    %cst_34 = arith.constant 1.000000e+00 : f32
    %122 = vector.broadcast %cst_34 : f32 to vector<8x128xf32>
    %123 = arith.addf %122, %121 : vector<8x128xf32>
    %124 = arith.divf %122, %123 : vector<8x128xf32>
    %125 = vector.extract_strided_slice %112 {offsets = [0, 256], sizes = [8, 128], strides = [1, 1]} : vector<8x512xf32> to vector<8x128xf32>
    %126 = math.tanh %125 : vector<8x128xf32>
    %127 = vector.extract_strided_slice %112 {offsets = [0, 384], sizes = [8, 128], strides = [1, 1]} : vector<8x512xf32> to vector<8x128xf32>
    %128 = arith.negf %127 : vector<8x128xf32>
    %129 = math.exp %128 : vector<8x128xf32>
    %cst_35 = arith.constant 1.000000e+00 : f32
    %130 = vector.broadcast %cst_35 : f32 to vector<8x128xf32>
    %131 = arith.addf %130, %129 : vector<8x128xf32>
    %132 = arith.divf %130, %131 : vector<8x128xf32>
    %133 = arith.mulf %124, %101 : vector<8x128xf32>
    %134 = arith.mulf %118, %126 : vector<8x128xf32>
    %135 = arith.addf %133, %134 : vector<8x128xf32>
    %136 = math.tanh %135 : vector<8x128xf32>
    %137 = arith.mulf %132, %136 : vector<8x128xf32>
    %138 = arith.index_cast %c3_i32 : i32 to index
    %c0_36 = arith.constant 0 : index
    %c0_37 = arith.constant 0 : index
    %139 = vector.load %arg11[%138, %c0_36, %c0_37] : memref<8x8x128xf32, #tpu.memory_space<vmem>>, vector<1x8x128xf32>
    %140 = vector.shape_cast %139 : vector<1x8x128xf32> to vector<8x128xf32>
    %141 = vector.shape_cast %137 : vector<8x128xf32> to vector<1x8x128xf32>
    tpu.vector_store %arg11[%138, %c0_36, %c0_37], %141 {strides = array<i32>} : memref<8x8x128xf32, #tpu.memory_space<vmem>>, vector<1x8x128xf32>,
    %c4_i32 = arith.constant 4 : i32
    %142 = arith.index_cast %c4_i32 : i32 to index
    %c0_38 = arith.constant 0 : index
    %c0_39 = arith.constant 0 : index
    %143 = vector.load %arg2[%142, %c0_38, %c0_39] : memref<8x8x512xf32, #tpu.memory_space<vmem>>, vector<1x8x512xf32>
    %144 = vector.shape_cast %143 : vector<1x8x512xf32> to vector<8x512xf32>
    %cst_40 = arith.constant dense<0.000000e+00> : vector<8x512xf32>
    %145 = tpu.matmul %137, %3, %cst_40 {dimension_numbers = #tpu.dot_dimension_numbers<[1], [0], [0], [1], [0, 0, 1, 1], [], []>} : vector<8x128xf32>, vector<128x512xf32>, vector<8x512xf32> -> vector<8x512xf32>
    %146 = arith.addf %144, %145 : vector<8x512xf32>
    %147 = vector.extract_strided_slice %146 {offsets = [0, 0], sizes = [8, 128], strides = [1, 1]} : vector<8x512xf32> to vector<8x128xf32>
    %148 = arith.negf %147 : vector<8x128xf32>
    %149 = math.exp %148 : vector<8x128xf32>
    %cst_41 = arith.constant 1.000000e+00 : f32
    %150 = vector.broadcast %cst_41 : f32 to vector<8x128xf32>
    %151 = arith.addf %150, %149 : vector<8x128xf32>
    %152 = arith.divf %150, %151 : vector<8x128xf32>
    %153 = vector.extract_strided_slice %146 {offsets = [0, 128], sizes = [8, 128], strides = [1, 1]} : vector<8x512xf32> to vector<8x128xf32>
    %154 = arith.negf %153 : vector<8x128xf32>
    %155 = math.exp %154 : vector<8x128xf32>
    %cst_42 = arith.constant 1.000000e+00 : f32
    %156 = vector.broadcast %cst_42 : f32 to vector<8x128xf32>
    %157 = arith.addf %156, %155 : vector<8x128xf32>
    %158 = arith.divf %156, %157 : vector<8x128xf32>
    %159 = vector.extract_strided_slice %146 {offsets = [0, 256], sizes = [8, 128], strides = [1, 1]} : vector<8x512xf32> to vector<8x128xf32>
    %160 = math.tanh %159 : vector<8x128xf32>
    %161 = vector.extract_strided_slice %146 {offsets = [0, 384], sizes = [8, 128], strides = [1, 1]} : vector<8x512xf32> to vector<8x128xf32>
    %162 = arith.negf %161 : vector<8x128xf32>
    %163 = math.exp %162 : vector<8x128xf32>
    %cst_43 = arith.constant 1.000000e+00 : f32
    %164 = vector.broadcast %cst_43 : f32 to vector<8x128xf32>
    %165 = arith.addf %164, %163 : vector<8x128xf32>
    %166 = arith.divf %164, %165 : vector<8x128xf32>
    %167 = arith.mulf %158, %135 : vector<8x128xf32>
    %168 = arith.mulf %152, %160 : vector<8x128xf32>
    %169 = arith.addf %167, %168 : vector<8x128xf32>
    %170 = math.tanh %169 : vector<8x128xf32>
    %171 = arith.mulf %166, %170 : vector<8x128xf32>
    %172 = arith.index_cast %c4_i32 : i32 to index
    %c0_44 = arith.constant 0 : index
    %c0_45 = arith.constant 0 : index
    %173 = vector.load %arg11[%172, %c0_44, %c0_45] : memref<8x8x128xf32, #tpu.memory_space<vmem>>, vector<1x8x128xf32>
    %174 = vector.shape_cast %173 : vector<1x8x128xf32> to vector<8x128xf32>
    %175 = vector.shape_cast %171 : vector<8x128xf32> to vector<1x8x128xf32>
    tpu.vector_store %arg11[%172, %c0_44, %c0_45], %175 {strides = array<i32>} : memref<8x8x128xf32, #tpu.memory_space<vmem>>, vector<1x8x128xf32>,
    %c5_i32 = arith.constant 5 : i32
    %176 = arith.index_cast %c5_i32 : i32 to index
    %c0_46 = arith.constant 0 : index
    %c0_47 = arith.constant 0 : index
    %177 = vector.load %arg2[%176, %c0_46, %c0_47] : memref<8x8x512xf32, #tpu.memory_space<vmem>>, vector<1x8x512xf32>
    %178 = vector.shape_cast %177 : vector<1x8x512xf32> to vector<8x512xf32>
    %cst_48 = arith.constant dense<0.000000e+00> : vector<8x512xf32>
    %179 = tpu.matmul %171, %3, %cst_48 {dimension_numbers = #tpu.dot_dimension_numbers<[1], [0], [0], [1], [0, 0, 1, 1], [], []>} : vector<8x128xf32>, vector<128x512xf32>, vector<8x512xf32> -> vector<8x512xf32>
    %180 = arith.addf %178, %179 : vector<8x512xf32>
    %181 = vector.extract_strided_slice %180 {offsets = [0, 0], sizes = [8, 128], strides = [1, 1]} : vector<8x512xf32> to vector<8x128xf32>
    %182 = arith.negf %181 : vector<8x128xf32>
    %183 = math.exp %182 : vector<8x128xf32>
    %cst_49 = arith.constant 1.000000e+00 : f32
    %184 = vector.broadcast %cst_49 : f32 to vector<8x128xf32>
    %185 = arith.addf %184, %183 : vector<8x128xf32>
    %186 = arith.divf %184, %185 : vector<8x128xf32>
    %187 = vector.extract_strided_slice %180 {offsets = [0, 128], sizes = [8, 128], strides = [1, 1]} : vector<8x512xf32> to vector<8x128xf32>
    %188 = arith.negf %187 : vector<8x128xf32>
    %189 = math.exp %188 : vector<8x128xf32>
    %cst_50 = arith.constant 1.000000e+00 : f32
    %190 = vector.broadcast %cst_50 : f32 to vector<8x128xf32>
    %191 = arith.addf %190, %189 : vector<8x128xf32>
    %192 = arith.divf %190, %191 : vector<8x128xf32>
    %193 = vector.extract_strided_slice %180 {offsets = [0, 256], sizes = [8, 128], strides = [1, 1]} : vector<8x512xf32> to vector<8x128xf32>
    %194 = math.tanh %193 : vector<8x128xf32>
    %195 = vector.extract_strided_slice %180 {offsets = [0, 384], sizes = [8, 128], strides = [1, 1]} : vector<8x512xf32> to vector<8x128xf32>
    %196 = arith.negf %195 : vector<8x128xf32>
    %197 = math.exp %196 : vector<8x128xf32>
    %cst_51 = arith.constant 1.000000e+00 : f32
    %198 = vector.broadcast %cst_51 : f32 to vector<8x128xf32>
    %199 = arith.addf %198, %197 : vector<8x128xf32>
    %200 = arith.divf %198, %199 : vector<8x128xf32>
    %201 = arith.mulf %192, %169 : vector<8x128xf32>
    %202 = arith.mulf %186, %194 : vector<8x128xf32>
    %203 = arith.addf %201, %202 : vector<8x128xf32>
    %204 = math.tanh %203 : vector<8x128xf32>
    %205 = arith.mulf %200, %204 : vector<8x128xf32>
    %206 = arith.index_cast %c5_i32 : i32 to index
    %c0_52 = arith.constant 0 : index
    %c0_53 = arith.constant 0 : index
    %207 = vector.load %arg11[%206, %c0_52, %c0_53] : memref<8x8x128xf32, #tpu.memory_space<vmem>>, vector<1x8x128xf32>
    %208 = vector.shape_cast %207 : vector<1x8x128xf32> to vector<8x128xf32>
    %209 = vector.shape_cast %205 : vector<8x128xf32> to vector<1x8x128xf32>
    tpu.vector_store %arg11[%206, %c0_52, %c0_53], %209 {strides = array<i32>} : memref<8x8x128xf32, #tpu.memory_space<vmem>>, vector<1x8x128xf32>,
    %c6_i32 = arith.constant 6 : i32
    %210 = arith.index_cast %c6_i32 : i32 to index
    %c0_54 = arith.constant 0 : index
    %c0_55 = arith.constant 0 : index
    %211 = vector.load %arg2[%210, %c0_54, %c0_55] : memref<8x8x512xf32, #tpu.memory_space<vmem>>, vector<1x8x512xf32>
    %212 = vector.shape_cast %211 : vector<1x8x512xf32> to vector<8x512xf32>
    %cst_56 = arith.constant dense<0.000000e+00> : vector<8x512xf32>
    %213 = tpu.matmul %205, %3, %cst_56 {dimension_numbers = #tpu.dot_dimension_numbers<[1], [0], [0], [1], [0, 0, 1, 1], [], []>} : vector<8x128xf32>, vector<128x512xf32>, vector<8x512xf32> -> vector<8x512xf32>
    %214 = arith.addf %212, %213 : vector<8x512xf32>
    %215 = vector.extract_strided_slice %214 {offsets = [0, 0], sizes = [8, 128], strides = [1, 1]} : vector<8x512xf32> to vector<8x128xf32>
    %216 = arith.negf %215 : vector<8x128xf32>
    %217 = math.exp %216 : vector<8x128xf32>
    %cst_57 = arith.constant 1.000000e+00 : f32
    %218 = vector.broadcast %cst_57 : f32 to vector<8x128xf32>
    %219 = arith.addf %218, %217 : vector<8x128xf32>
    %220 = arith.divf %218, %219 : vector<8x128xf32>
    %221 = vector.extract_strided_slice %214 {offsets = [0, 128], sizes = [8, 128], strides = [1, 1]} : vector<8x512xf32> to vector<8x128xf32>
    %222 = arith.negf %221 : vector<8x128xf32>
    %223 = math.exp %222 : vector<8x128xf32>
    %cst_58 = arith.constant 1.000000e+00 : f32
    %224 = vector.broadcast %cst_58 : f32 to vector<8x128xf32>
    %225 = arith.addf %224, %223 : vector<8x128xf32>
    %226 = arith.divf %224, %225 : vector<8x128xf32>
    %227 = vector.extract_strided_slice %214 {offsets = [0, 256], sizes = [8, 128], strides = [1, 1]} : vector<8x512xf32> to vector<8x128xf32>
    %228 = math.tanh %227 : vector<8x128xf32>
    %229 = vector.extract_strided_slice %214 {offsets = [0, 384], sizes = [8, 128], strides = [1, 1]} : vector<8x512xf32> to vector<8x128xf32>
    %230 = arith.negf %229 : vector<8x128xf32>
    %231 = math.exp %230 : vector<8x128xf32>
    %cst_59 = arith.constant 1.000000e+00 : f32
    %232 = vector.broadcast %cst_59 : f32 to vector<8x128xf32>
    %233 = arith.addf %232, %231 : vector<8x128xf32>
    %234 = arith.divf %232, %233 : vector<8x128xf32>
    %235 = arith.mulf %226, %203 : vector<8x128xf32>
    %236 = arith.mulf %220, %228 : vector<8x128xf32>
    %237 = arith.addf %235, %236 : vector<8x128xf32>
    %238 = math.tanh %237 : vector<8x128xf32>
    %239 = arith.mulf %234, %238 : vector<8x128xf32>
    %240 = arith.index_cast %c6_i32 : i32 to index
    %c0_60 = arith.constant 0 : index
    %c0_61 = arith.constant 0 : index
    %241 = vector.load %arg11[%240, %c0_60, %c0_61] : memref<8x8x128xf32, #tpu.memory_space<vmem>>, vector<1x8x128xf32>
    %242 = vector.shape_cast %241 : vector<1x8x128xf32> to vector<8x128xf32>
    %243 = vector.shape_cast %239 : vector<8x128xf32> to vector<1x8x128xf32>
    tpu.vector_store %arg11[%240, %c0_60, %c0_61], %243 {strides = array<i32>} : memref<8x8x128xf32, #tpu.memory_space<vmem>>, vector<1x8x128xf32>,
    %c7_i32 = arith.constant 7 : i32
    %244 = arith.index_cast %c7_i32 : i32 to index
    %c0_62 = arith.constant 0 : index
    %c0_63 = arith.constant 0 : index
    %245 = vector.load %arg2[%244, %c0_62, %c0_63] : memref<8x8x512xf32, #tpu.memory_space<vmem>>, vector<1x8x512xf32>
    %246 = vector.shape_cast %245 : vector<1x8x512xf32> to vector<8x512xf32>
    %cst_64 = arith.constant dense<0.000000e+00> : vector<8x512xf32>
    %247 = tpu.matmul %239, %3, %cst_64 {dimension_numbers = #tpu.dot_dimension_numbers<[1], [0], [0], [1], [0, 0, 1, 1], [], []>} : vector<8x128xf32>, vector<128x512xf32>, vector<8x512xf32> -> vector<8x512xf32>
    %248 = arith.addf %246, %247 : vector<8x512xf32>
    %249 = vector.extract_strided_slice %248 {offsets = [0, 0], sizes = [8, 128], strides = [1, 1]} : vector<8x512xf32> to vector<8x128xf32>
    %250 = arith.negf %249 : vector<8x128xf32>
    %251 = math.exp %250 : vector<8x128xf32>
    %cst_65 = arith.constant 1.000000e+00 : f32
    %252 = vector.broadcast %cst_65 : f32 to vector<8x128xf32>
    %253 = arith.addf %252, %251 : vector<8x128xf32>
    %254 = arith.divf %252, %253 : vector<8x128xf32>
    %255 = vector.extract_strided_slice %248 {offsets = [0, 128], sizes = [8, 128], strides = [1, 1]} : vector<8x512xf32> to vector<8x128xf32>
    %256 = arith.negf %255 : vector<8x128xf32>
    %257 = math.exp %256 : vector<8x128xf32>
    %cst_66 = arith.constant 1.000000e+00 : f32
    %258 = vector.broadcast %cst_66 : f32 to vector<8x128xf32>
    %259 = arith.addf %258, %257 : vector<8x128xf32>
    %260 = arith.divf %258, %259 : vector<8x128xf32>
    %261 = vector.extract_strided_slice %248 {offsets = [0, 256], sizes = [8, 128], strides = [1, 1]} : vector<8x512xf32> to vector<8x128xf32>
    %262 = math.tanh %261 : vector<8x128xf32>
    %263 = vector.extract_strided_slice %248 {offsets = [0, 384], sizes = [8, 128], strides = [1, 1]} : vector<8x512xf32> to vector<8x128xf32>
    %264 = arith.negf %263 : vector<8x128xf32>
    %265 = math.exp %264 : vector<8x128xf32>
    %cst_67 = arith.constant 1.000000e+00 : f32
    %266 = vector.broadcast %cst_67 : f32 to vector<8x128xf32>
    %267 = arith.addf %266, %265 : vector<8x128xf32>
    %268 = arith.divf %266, %267 : vector<8x128xf32>
    %269 = arith.mulf %260, %237 : vector<8x128xf32>
    %270 = arith.mulf %254, %262 : vector<8x128xf32>
    %271 = arith.addf %269, %270 : vector<8x128xf32>
    %272 = math.tanh %271 : vector<8x128xf32>
    %273 = arith.mulf %268, %272 : vector<8x128xf32>
    %274 = arith.index_cast %c7_i32 : i32 to index
    %c0_68 = arith.constant 0 : index
    %c0_69 = arith.constant 0 : index
    %275 = vector.load %arg11[%274, %c0_68, %c0_69] : memref<8x8x128xf32, #tpu.memory_space<vmem>>, vector<1x8x128xf32>
    %276 = vector.shape_cast %275 : vector<1x8x128xf32> to vector<8x128xf32>
    %277 = vector.shape_cast %273 : vector<8x128xf32> to vector<1x8x128xf32>
    tpu.vector_store %arg11[%274, %c0_68, %c0_69], %277 {strides = array<i32>} : memref<8x8x128xf32, #tpu.memory_space<vmem>>, vector<1x8x128xf32>,
    %c8_i32 = arith.constant 8 : i32
    %c0_70 = arith.constant 0 : index
    %c0_71 = arith.constant 0 : index
    %278 = vector.load %arg9[%c0_70, %c0_71] : memref<8x128xf32, #tpu.memory_space<vmem>>, vector<8x128xf32>
    tpu.vector_store %arg9[%c0_70, %c0_71], %273 {strides = array<i32>} : memref<8x128xf32, #tpu.memory_space<vmem>>, vector<8x128xf32>,
    %c0_72 = arith.constant 0 : index
    %c0_73 = arith.constant 0 : index
    %279 = vector.load %arg10[%c0_72, %c0_73] : memref<8x128xf32, #tpu.memory_space<vmem>>, vector<8x128xf32>
    tpu.vector_store %arg10[%c0_72, %c0_73], %271 {strides = array<i32>} : memref<8x128xf32, #tpu.memory_space<vmem>>, vector<8x128xf32>,
    %c0_74 = arith.constant 0 : index
    %c0_75 = arith.constant 0 : index
    %c0_76 = arith.constant 0 : index
    %280 = vector.load %arg11[%c0_74, %c0_75, %c0_76] : memref<8x8x128xf32, #tpu.memory_space<vmem>>, vector<1x8x128xf32>
    %281 = vector.shape_cast %280 : vector<1x8x128xf32> to vector<8x128xf32>
    %c0_77 = arith.constant 0 : index
    %c0_78 = arith.constant 0 : index
    %c0_79 = arith.constant 0 : index
    %282 = vector.load %arg6[%c0_77, %c0_78, %c0_79] : memref<8x8x128xf32, #tpu.memory_space<vmem>>, vector<8x1x128xf32>
    %283 = vector.shape_cast %282 : vector<8x1x128xf32> to vector<8x128xf32>
    %284 = vector.shape_cast %281 : vector<8x128xf32> to vector<8x1x128xf32>
    tpu.vector_store %arg6[%c0_77, %c0_78, %c0_79], %284 {strides = array<i32>} : memref<8x8x128xf32, #tpu.memory_space<vmem>>, vector<8x1x128xf32>,
    %c1 = arith.constant 1 : index
    %c0_80 = arith.constant 0 : index
    %c0_81 = arith.constant 0 : index
    %285 = vector.load %arg11[%c1, %c0_80, %c0_81] : memref<8x8x128xf32, #tpu.memory_space<vmem>>, vector<1x8x128xf32>
    %286 = vector.shape_cast %285 : vector<1x8x128xf32> to vector<8x128xf32>
    %c0_82 = arith.constant 0 : index
    %c1_83 = arith.constant 1 : index
    %c0_84 = arith.constant 0 : index
    %287 = vector.load %arg6[%c0_82, %c1_83, %c0_84] : memref<8x8x128xf32, #tpu.memory_space<vmem>>, vector<8x1x128xf32>
    %288 = vector.shape_cast %287 : vector<8x1x128xf32> to vector<8x128xf32>
    %289 = vector.shape_cast %286 : vector<8x128xf32> to vector<8x1x128xf32>
    tpu.vector_store %arg6[%c0_82, %c1_83, %c0_84], %289 {strides = array<i32>} : memref<8x8x128xf32, #tpu.memory_space<vmem>>, vector<8x1x128xf32>,
    %c2 = arith.constant 2 : index
    %c0_85 = arith.constant 0 : index
    %c0_86 = arith.constant 0 : index
    %290 = vector.load %arg11[%c2, %c0_85, %c0_86] : memref<8x8x128xf32, #tpu.memory_space<vmem>>, vector<1x8x128xf32>
    %291 = vector.shape_cast %290 : vector<1x8x128xf32> to vector<8x128xf32>
    %c0_87 = arith.constant 0 : index
    %c2_88 = arith.constant 2 : index
    %c0_89 = arith.constant 0 : index
    %292 = vector.load %arg6[%c0_87, %c2_88, %c0_89] : memref<8x8x128xf32, #tpu.memory_space<vmem>>, vector<8x1x128xf32>
    %293 = vector.shape_cast %292 : vector<8x1x128xf32> to vector<8x128xf32>
    %294 = vector.shape_cast %291 : vector<8x128xf32> to vector<8x1x128xf32>
    tpu.vector_store %arg6[%c0_87, %c2_88, %c0_89], %294 {strides = array<i32>} : memref<8x8x128xf32, #tpu.memory_space<vmem>>, vector<8x1x128xf32>,
    %c3 = arith.constant 3 : index
    %c0_90 = arith.constant 0 : index
    %c0_91 = arith.constant 0 : index
    %295 = vector.load %arg11[%c3, %c0_90, %c0_91] : memref<8x8x128xf32, #tpu.memory_space<vmem>>, vector<1x8x128xf32>
    %296 = vector.shape_cast %295 : vector<1x8x128xf32> to vector<8x128xf32>
    %c0_92 = arith.constant 0 : index
    %c3_93 = arith.constant 3 : index
    %c0_94 = arith.constant 0 : index
    %297 = vector.load %arg6[%c0_92, %c3_93, %c0_94] : memref<8x8x128xf32, #tpu.memory_space<vmem>>, vector<8x1x128xf32>
    %298 = vector.shape_cast %297 : vector<8x1x128xf32> to vector<8x128xf32>
    %299 = vector.shape_cast %296 : vector<8x128xf32> to vector<8x1x128xf32>
    tpu.vector_store %arg6[%c0_92, %c3_93, %c0_94], %299 {strides = array<i32>} : memref<8x8x128xf32, #tpu.memory_space<vmem>>, vector<8x1x128xf32>,
    %c4 = arith.constant 4 : index
    %c0_95 = arith.constant 0 : index
    %c0_96 = arith.constant 0 : index
    %300 = vector.load %arg11[%c4, %c0_95, %c0_96] : memref<8x8x128xf32, #tpu.memory_space<vmem>>, vector<1x8x128xf32>
    %301 = vector.shape_cast %300 : vector<1x8x128xf32> to vector<8x128xf32>
    %c0_97 = arith.constant 0 : index
    %c4_98 = arith.constant 4 : index
    %c0_99 = arith.constant 0 : index
    %302 = vector.load %arg6[%c0_97, %c4_98, %c0_99] : memref<8x8x128xf32, #tpu.memory_space<vmem>>, vector<8x1x128xf32>
    %303 = vector.shape_cast %302 : vector<8x1x128xf32> to vector<8x128xf32>
    %304 = vector.shape_cast %301 : vector<8x128xf32> to vector<8x1x128xf32>
    tpu.vector_store %arg6[%c0_97, %c4_98, %c0_99], %304 {strides = array<i32>} : memref<8x8x128xf32, #tpu.memory_space<vmem>>, vector<8x1x128xf32>,
    %c5 = arith.constant 5 : index
    %c0_100 = arith.constant 0 : index
    %c0_101 = arith.constant 0 : index
    %305 = vector.load %arg11[%c5, %c0_100, %c0_101] : memref<8x8x128xf32, #tpu.memory_space<vmem>>, vector<1x8x128xf32>
    %306 = vector.shape_cast %305 : vector<1x8x128xf32> to vector<8x128xf32>
    %c0_102 = arith.constant 0 : index
    %c5_103 = arith.constant 5 : index
    %c0_104 = arith.constant 0 : index
    %307 = vector.load %arg6[%c0_102, %c5_103, %c0_104] : memref<8x8x128xf32, #tpu.memory_space<vmem>>, vector<8x1x128xf32>
    %308 = vector.shape_cast %307 : vector<8x1x128xf32> to vector<8x128xf32>
    %309 = vector.shape_cast %306 : vector<8x128xf32> to vector<8x1x128xf32>
    tpu.vector_store %arg6[%c0_102, %c5_103, %c0_104], %309 {strides = array<i32>} : memref<8x8x128xf32, #tpu.memory_space<vmem>>, vector<8x1x128xf32>,
    %c6 = arith.constant 6 : index
    %c0_105 = arith.constant 0 : index
    %c0_106 = arith.constant 0 : index
    %310 = vector.load %arg11[%c6, %c0_105, %c0_106] : memref<8x8x128xf32, #tpu.memory_space<vmem>>, vector<1x8x128xf32>
    %311 = vector.shape_cast %310 : vector<1x8x128xf32> to vector<8x128xf32>
    %c0_107 = arith.constant 0 : index
    %c6_108 = arith.constant 6 : index
    %c0_109 = arith.constant 0 : index
    %312 = vector.load %arg6[%c0_107, %c6_108, %c0_109] : memref<8x8x128xf32, #tpu.memory_space<vmem>>, vector<8x1x128xf32>
    %313 = vector.shape_cast %312 : vector<8x1x128xf32> to vector<8x128xf32>
    %314 = vector.shape_cast %311 : vector<8x128xf32> to vector<8x1x128xf32>
    tpu.vector_store %arg6[%c0_107, %c6_108, %c0_109], %314 {strides = array<i32>} : memref<8x8x128xf32, #tpu.memory_space<vmem>>, vector<8x1x128xf32>,
    %c7 = arith.constant 7 : index
    %c0_110 = arith.constant 0 : index
    %c0_111 = arith.constant 0 : index
    %315 = vector.load %arg11[%c7, %c0_110, %c0_111] : memref<8x8x128xf32, #tpu.memory_space<vmem>>, vector<1x8x128xf32>
    %316 = vector.shape_cast %315 : vector<1x8x128xf32> to vector<8x128xf32>
    %c0_112 = arith.constant 0 : index
    %c7_113 = arith.constant 7 : index
    %c0_114 = arith.constant 0 : index
    %317 = vector.load %arg6[%c0_112, %c7_113, %c0_114] : memref<8x8x128xf32, #tpu.memory_space<vmem>>, vector<8x1x128xf32>
    %318 = vector.shape_cast %317 : vector<8x1x128xf32> to vector<8x128xf32>
    %319 = vector.shape_cast %316 : vector<8x128xf32> to vector<8x1x128xf32>
    tpu.vector_store %arg6[%c0_112, %c7_113, %c0_114], %319 {strides = array<i32>} : memref<8x8x128xf32, #tpu.memory_space<vmem>>, vector<8x1x128xf32>,
    %c0_i32_115 = arith.constant 0 : i32
    %320 = arith.cmpi eq, %arg1, %c0_i32_115 : i32
    %321 = arith.extui %320 : i1 to i32
    %c0_i32_116 = arith.constant 0 : i32
    %322 = arith.cmpi ne, %321, %c0_i32_116 : i32
    scf.if %322 {
      %c0_117 = arith.constant 0 : index
      %c0_118 = arith.constant 0 : index
      %323 = vector.load %arg7[%c0_117, %c0_118] : memref<8x128xf32, #tpu.memory_space<vmem>>, vector<8x128xf32>
      tpu.vector_store %arg7[%c0_117, %c0_118], %273 {strides = array<i32>} : memref<8x128xf32, #tpu.memory_space<vmem>>, vector<8x128xf32>,
      %c0_119 = arith.constant 0 : index
      %c0_120 = arith.constant 0 : index
      %324 = vector.load %arg8[%c0_119, %c0_120] : memref<8x128xf32, #tpu.memory_space<vmem>>, vector<8x128xf32>
      tpu.vector_store %arg8[%c0_119, %c0_120], %271 {strides = array<i32>} : memref<8x128xf32, #tpu.memory_space<vmem>>, vector<8x128xf32>,
    } else {
    }
    return
  }
  func.func @transform_0(%arg0: i32, %arg1: i32) -> (i32, i32, i32) {
    %c0_i32 = arith.constant 0 : i32
    %c0_i32_0 = arith.constant 0 : i32
    return %arg1, %arg0, %c0_i32 : i32, i32, i32
  }
  func.func @transform_1(%arg0: i32, %arg1: i32) -> (i32, i32) {
    %c0_i32 = arith.constant 0 : i32
    %c0_i32_0 = arith.constant 0 : i32
    return %arg0, %c0_i32 : i32, i32
  }
  func.func @transform_2(%arg0: i32, %arg1: i32) -> (i32, i32) {
    %c0_i32 = arith.constant 0 : i32
    %c0_i32_0 = arith.constant 0 : i32
    return %arg0, %c0_i32 : i32, i32
  }
  func.func @transform_3(%arg0: i32, %arg1: i32) -> (i32, i32) {
    %c0_i32 = arith.constant 0 : i32
    %c0_i32_0 = arith.constant 0 : i32
    %c0_i32_1 = arith.constant 0 : i32
    return %c0_i32, %c0_i32_0 : i32, i32
  }
  func.func @transform_4(%arg0: i32, %arg1: i32) -> (i32, i32, i32) {
    %c0_i32 = arith.constant 0 : i32
    %c0_i32_0 = arith.constant 0 : i32
    return %arg0, %arg1, %c0_i32 : i32, i32, i32
  }
  func.func @transform_5(%arg0: i32, %arg1: i32) -> (i32, i32) {
    %c0_i32 = arith.constant 0 : i32
    %c0_i32_0 = arith.constant 0 : i32
    return %arg0, %c0_i32 : i32, i32
  }
  func.func @transform_6(%arg0: i32, %arg1: i32) -> (i32, i32) {
    %c0_i32 = arith.constant 0 : i32
    %c0_i32_0 = arith.constant 0 : i32
    return %arg0, %c0_i32 : i32, i32
  }
}

</mosaic_0001>

<llo_original>
// kernel: tpu_custom_call.1
$region0: #{tpu_custom_call.1}
  #allocation0 [shape = 'u32[]', space=smem, size = 0x4, offset = 0x4, fixed_abs, tag = 'smem constant byte address 0x4 - core index']
  #allocation1 [shape = 'u32[72,128]{1,0:T(1,128)}', space=vmem, size = 0x9000, scoped, tag = 'internal scratch']
  #allocation2 [shape = 'f32[8,128]{1,0:T(8,128)}', space=vmem, size = 0x1000, scoped, tag = 'scratch operand']
  #allocation3 [shape = 'f32[8,128]{1,0:T(8,128)}', space=vmem, size = 0x1000, scoped, tag = 'scratch operand']
  #allocation4 [shape = 'f32[8,8,128]{2,1,0:T(8,128)}', space=vmem, size = 0x8000, scoped, tag = 'scratch operand']
  %s0 = inlined_call_operand.hbm [shape: f32[8,8,512], index: 0, kind: input, shape index: {}]
  %s1 = inlined_call_operand.hbm [shape: f32[8,128], index: 1, kind: input, shape index: {}]
  %s2 = inlined_call_operand.hbm [shape: f32[8,128], index: 2, kind: input, shape index: {}]
  %s3 = inlined_call_operand.hbm [shape: f32[128,512], index: 3, kind: input, shape index: {}]
  %s4 = inlined_call_operand.hbm [shape: f32[8,8,128], index: 4, kind: output, shape index: {0}]
  %s5 = inlined_call_operand.hbm [shape: f32[8,128], index: 5, kind: output, shape index: {1}]
  %s6 = inlined_call_operand.hbm [shape: f32[8,128], index: 6, kind: output, shape index: {2}]
  %7 = xla_tuple %s4, %s5, %s6
  %s8 = sld [smem:[#allocation0]]
  $region66: #{tpu_custom_call.1} parent=0
    _
  %s10 = ssub.s32 1, %s8
  %s11 = scalar_select 0, %s10, %s8
  $region1: #{tpu_custom_call.1} parent=0
    #allocation5 [shape = 'u8[131072]{0}', space=vmem, size = 0x20000, scoped, tag = 'input window, operand 0, single buffered']
    #allocation6 [shape = 's32[1]{0}', space=sflag, size = 0x4, scoped, tag = 'scoped memory for tpu_custom_call.1']
    #allocation7 [shape = 's32[1]{0}', space=sflag, size = 0x4, scoped, tag = 'scoped memory for tpu_custom_call.1']
    #allocation8 [shape = 'u8[4096]{0}', space=vmem, size = 0x1000, scoped, tag = 'input window, operand 1, single buffered']
    #allocation9 [shape = 's32[1]{0}', space=sflag, size = 0x4, scoped, tag = 'scoped memory for tpu_custom_call.1']
    #allocation10 [shape = 'u8[4096]{0}', space=vmem, size = 0x1000, scoped, tag = 'input window, operand 2, single buffered']
    #allocation11 [shape = 'u8[262144]{0}', space=vmem, size = 0x40000, scoped, tag = 'input window, operand 3, single buffered']
    #allocation12 [shape = 's32[1]{0}', space=sflag, size = 0x4, scoped, tag = 'scoped memory for tpu_custom_call.1']
    #allocation13 [shape = 'u8[32768]{0}', space=vmem, size = 0x8000, scoped, tag = 'output window, operand 0, single buffered']
    #allocation14 [shape = 'u8[4096]{0}', space=vmem, size = 0x1000, scoped, tag = 'output window, operand 1, single buffered']
    #allocation15 [shape = 's32[1]{0}', space=sflag, size = 0x4, scoped, tag = 'scoped memory for tpu_custom_call.1']
    #allocation16 [shape = 'u8[4096]{0}', space=vmem, size = 0x1000, scoped, tag = 'output window, operand 2, single buffered']
    %12 = vsyncpa [#allocation6], 0
    %13 = vsyncpa [#allocation9], 0
    %14 = vsyncpa [#allocation12], 0
    %15 = vsyncpa [#allocation7], 0
    %16 = vsyncpa [#allocation15], 0
    // Predicated region
    $region2: #{tpu_custom_call.1} parent=1 // pred_check
      _
    $region3: #{tpu_custom_call.1} parent=1 // pred_check_branch
      %18 = sbr.rel (0) target = $region5
    $region4: #{tpu_custom_call.1} parent=1 // pred_region
      %20 = vsyncadd [#allocation6], 0
      %s21 = sshll.u32 %s0, 4
      %s22 = int_to_ptr.hbm [resolvable:$true] %s21
      %s23 = sshll.u32 [#allocation5], 4
      %s24 = int_to_ptr.vmem [resolvable:$true] %s23
      %29 = dma.hbm_to_vmem [thread:$0]  %s22, 4096, %s24, [#allocation6], 512, 512, 32
    $region5: #{tpu_custom_call.1} parent=1 // pred_fallthru
      _
    // Predicated region
    $region6: #{tpu_custom_call.1} parent=1 // pred_check
      _
    $region7: #{tpu_custom_call.1} parent=1 // pred_check_branch
      %31 = sbr.rel (0) target = $region9
    $region8: #{tpu_custom_call.1} parent=1 // pred_region
      %33 = vsyncadd [#allocation9], 0
      %s35 = sshll.u32 %s1, 4
      %s36 = int_to_ptr.hbm [resolvable:$true] %s35
      %s37 = sshll.u32 [#allocation8], 4
      %s38 = int_to_ptr.vmem [resolvable:$true] %s37
      %40 = dma.hbm_to_vmem [thread:$0]  %s36, 128, %s38, [#allocation9]
    $region9: #{tpu_custom_call.1} parent=1 // pred_fallthru
      _
    // Predicated region
    $region10: #{tpu_custom_call.1} parent=1 // pred_check
      _
    $region11: #{tpu_custom_call.1} parent=1 // pred_check_branch
      %42 = sbr.rel (0) target = $region13
    $region12: #{tpu_custom_call.1} parent=1 // pred_region
      %44 = vsyncadd [#allocation9], 0
      %s46 = sshll.u32 %s2, 4
      %s47 = int_to_ptr.hbm [resolvable:$true] %s46
      %s48 = sshll.u32 [#allocation10], 4
      %s49 = int_to_ptr.vmem [resolvable:$true] %s48
      %51 = dma.hbm_to_vmem [thread:$0]  %s47, 128, %s49, [#allocation9]
    $region13: #{tpu_custom_call.1} parent=1 // pred_fallthru
      _
    // Predicated region
    $region14: #{tpu_custom_call.1} parent=1 // pred_check
      _
    $region15: #{tpu_custom_call.1} parent=1 // pred_check_branch
      %53 = sbr.rel (0) target = $region17
    $region16: #{tpu_custom_call.1} parent=1 // pred_region
      %55 = vsyncadd [#allocation12], 0
      %s56 = sshll.u32 %s3, 4
      %s57 = int_to_ptr.hbm [resolvable:$true] %s56
      %s58 = sshll.u32 [#allocation11], 4
      %s59 = int_to_ptr.vmem [resolvable:$true] %s58
      %64 = dma.hbm_to_vmem [thread:$0]  %s57, 8192, %s59, [#allocation12], 512, 512, 32
    $region17: #{tpu_custom_call.1} parent=1 // pred_fallthru
      _
    // Predicated region
    $region18: #{tpu_custom_call.1} parent=1 // pred_check
      _
    $region19: #{tpu_custom_call.1} parent=1 // pred_check_branch
      %66 = sbr.rel (0) target = $region21
    $region20: #{tpu_custom_call.1} parent=1 // pred_region
      %68 = dma.done [#allocation6], 4096
    $region21: #{tpu_custom_call.1} parent=1 // pred_fallthru
      _
    // Predicated region
    $region22: #{tpu_custom_call.1} parent=1 // pred_check
      _
    $region23: #{tpu_custom_call.1} parent=1 // pred_check_branch
      %70 = sbr.rel (0) target = $region25
    $region24: #{tpu_custom_call.1} parent=1 // pred_region
      %72 = dma.done [#allocation9], 128
    $region25: #{tpu_custom_call.1} parent=1 // pred_fallthru
      _
    // Predicated region
    $region26: #{tpu_custom_call.1} parent=1 // pred_check
      _
    $region27: #{tpu_custom_call.1} parent=1 // pred_check_branch
      %74 = sbr.rel (0) target = $region29
    $region28: #{tpu_custom_call.1} parent=1 // pred_region
      %76 = dma.done [#allocation9], 128
    $region29: #{tpu_custom_call.1} parent=1 // pred_fallthru
      _
    // Predicated region
    $region30: #{tpu_custom_call.1} parent=1 // pred_check
      _
    $region31: #{tpu_custom_call.1} parent=1 // pred_check_branch
      %78 = sbr.rel (0) target = $region33
    $region32: #{tpu_custom_call.1} parent=1 // pred_region
      %80 = dma.done [#allocation12], 8192
    $region33: #{tpu_custom_call.1} parent=1 // pred_fallthru
      _
    %p81 = scmp.eq.s32.totalorder 0, 0
    // Predicated region
    $region34: #{tpu_custom_call.1} parent=1 // pred_check
      %p82 = pneg %p81
    $region35: #{tpu_custom_call.1} parent=1 // pred_check_branch
      %84 = sbr.rel (%p82) target = $region37
    $region36: #{tpu_custom_call.1} parent=1 // pred_region
      %v85 = vld [vmem:[#allocation8] sm:$0xff]
      %86 = vst [vmem:[#allocation2] sm:$0xff] %v85
      %v87 = vld [vmem:[#allocation10] sm:$0xff]
      %88 = vst [vmem:[#allocation3] sm:$0xff] %v87
    $region37: #{tpu_custom_call.1} parent=1 // pred_fallthru
      _
    %v89 = vld [vmem:[#allocation11] sm:$0xff]
    %v90 = vld [vmem:[#allocation11 + $0x8] sm:$0xff]
    %v91 = vld [vmem:[#allocation11 + $0x10] sm:$0xff]
    %v92 = vld [vmem:[#allocation11 + $0x18] sm:$0xff]
    %v93 = vld [vmem:[#allocation11 + $0x20] sm:$0xff]
    %v94 = vld [vmem:[#allocation11 + $0x28] sm:$0xff]
    %v95 = vld [vmem:[#allocation11 + $0x30] sm:$0xff]
    %v96 = vld [vmem:[#allocation11 + $0x38] sm:$0xff]
    %v97 = vld [vmem:[#allocation11 + $0x40] sm:$0xff]
    %v98 = vld [vmem:[#allocation11 + $0x48] sm:$0xff]
    %v99 = vld [vmem:[#allocation11 + $0x50] sm:$0xff]
    %v100 = vld [vmem:[#allocation11 + $0x58] sm:$0xff]
    %v101 = vld [vmem:[#allocation11 + $0x60] sm:$0xff]
    %v102 = vld [vmem:[#allocation11 + $0x68] sm:$0xff]
    %v103 = vld [vmem:[#allocation11 + $0x70] sm:$0xff]
    %v104 = vld [vmem:[#allocation11 + $0x78] sm:$0xff]
    %v105 = vld [vmem:[#allocation11 + $0x80] sm:$0xff]
    %v106 = vld [vmem:[#allocation11 + $0x88] sm:$0xff]
    %v107 = vld [vmem:[#allocation11 + $0x90] sm:$0xff]
    %v108 = vld [vmem:[#allocation11 + $0x98] sm:$0xff]
    %v109 = vld [vmem:[#allocation11 + $0xa0] sm:$0xff]
    %v110 = vld [vmem:[#allocation11 + $0xa8] sm:$0xff]
    %v111 = vld [vmem:[#allocation11 + $0xb0] sm:$0xff]
    %v112 = vld [vmem:[#allocation11 + $0xb8] sm:$0xff]
    %v113 = vld [vmem:[#allocation11 + $0xc0] sm:$0xff]
    %v114 = vld [vmem:[#allocation11 + $0xc8] sm:$0xff]
    %v115 = vld [vmem:[#allocation11 + $0xd0] sm:$0xff]
    %v116 = vld [vmem:[#allocation11 + $0xd8] sm:$0xff]
    %v117 = vld [vmem:[#allocation11 + $0xe0] sm:$0xff]
    %v118 = vld [vmem:[#allocation11 + $0xe8] sm:$0xff]
    %v119 = vld [vmem:[#allocation11 + $0xf0] sm:$0xff]
    %v120 = vld [vmem:[#allocation11 + $0xf8] sm:$0xff]
    %v121 = vld [vmem:[#allocation11 + $0x100] sm:$0xff]
    %v122 = vld [vmem:[#allocation11 + $0x108] sm:$0xff]
    %v123 = vld [vmem:[#allocation11 + $0x110] sm:$0xff]
    %v124 = vld [vmem:[#allocation11 + $0x118] sm:$0xff]
    %v125 = vld [vmem:[#allocation11 + $0x120] sm:$0xff]
    %v126 = vld [vmem:[#allocation11 + $0x128] sm:$0xff]
    %v127 = vld [vmem:[#allocation11 + $0x130] sm:$0xff]
    %v128 = vld [vmem:[#allocation11 + $0x138] sm:$0xff]
    %v129 = vld [vmem:[#allocation11 + $0x140] sm:$0xff]
    %v130 = vld [vmem:[#allocation11 + $0x148] sm:$0xff]
    %v131 = vld [vmem:[#allocation11 + $0x150] sm:$0xff]
    %v132 = vld [vmem:[#allocation11 + $0x158] sm:$0xff]
    %v133 = vld [vmem:[#allocation11 + $0x160] sm:$0xff]
    %v134 = vld [vmem:[#allocation11 + $0x168] sm:$0xff]
    %v135 = vld [vmem:[#allocation11 + $0x170] sm:$0xff]
    %v136 = vld [vmem:[#allocation11 + $0x178] sm:$0xff]
    %v137 = vld [vmem:[#allocation11 + $0x180] sm:$0xff]
    %v138 = vld [vmem:[#allocation11 + $0x188] sm:$0xff]
    %v139 = vld [vmem:[#allocation11 + $0x190] sm:$0xff]
    %v140 = vld [vmem:[#allocation11 + $0x198] sm:$0xff]
    %v141 = vld [vmem:[#allocation11 + $0x1a0] sm:$0xff]
    %v142 = vld [vmem:[#allocation11 + $0x1a8] sm:$0xff]
    %v143 = vld [vmem:[#allocation11 + $0x1b0] sm:$0xff]
    %v144 = vld [vmem:[#allocation11 + $0x1b8] sm:$0xff]
    %v145 = vld [vmem:[#allocation11 + $0x1c0] sm:$0xff]
    %v146 = vld [vmem:[#allocation11 + $0x1c8] sm:$0xff]
    %v147 = vld [vmem:[#allocation11 + $0x1d0] sm:$0xff]
    %v148 = vld [vmem:[#allocation11 + $0x1d8] sm:$0xff]
    %v149 = vld [vmem:[#allocation11 + $0x1e0] sm:$0xff]
    %v150 = vld [vmem:[#allocation11 + $0x1e8] sm:$0xff]
    %v151 = vld [vmem:[#allocation11 + $0x1f0] sm:$0xff]
    %v152 = vld [vmem:[#allocation11 + $0x1f8] sm:$0xff]
    %v153 = vld [vmem:[#allocation2] sm:$0xff]
    %v154 = vld [vmem:[#allocation3] sm:$0xff]
    %v155 = vld [vmem:[#allocation5] sm:$0xff]
    %v156 = vld [vmem:[#allocation5 + $0x8] sm:$0xff]
    %v157 = vld [vmem:[#allocation5 + $0x10] sm:$0xff]
    %v158 = vld [vmem:[#allocation5 + $0x18] sm:$0xff]
    %159 = vmatpush.msra.mxu0 %v149
    %160 = vmatpush.msra.mxu0 %v145
    %161 = vmatpush.msra.mxu0 %v141
    %162 = vmatpush.msra.mxu0 %v137
    %163 = vmatpush.msra.mxu0 %v133
    %164 = vmatpush.msra.mxu0 %v129
    %165 = vmatpush.msra.mxu0 %v125
    %166 = vmatpush.msra.mxu0 %v121
    %167 = vmatpush.msra.mxu0 %v117
    %168 = vmatpush.msra.mxu0 %v113
    %169 = vmatpush.msra.mxu0 %v109
    %170 = vmatpush.msra.mxu0 %v105
    %171 = vmatpush.msra.mxu0 %v101
    %172 = vmatpush.msra.mxu0 %v97
    %173 = vmatpush.msra.mxu0 %v93
    %174 = vmatpush.msra.mxu0 %v89
    %175 = vmatmul.f32.gmra.mxu0 %v153
    %v176 = vpop.f32.mrf.mxu0
    %v177 = vadd.f32 0.0, %v176
    %178 = vdwg.mxu0
    %179 = vmatpush.msra.mxu0 %v150
    %180 = vmatpush.msra.mxu0 %v146
    %181 = vmatpush.msra.mxu0 %v142
    %182 = vmatpush.msra.mxu0 %v138
    %183 = vmatpush.msra.mxu0 %v134
    %184 = vmatpush.msra.mxu0 %v130
    %185 = vmatpush.msra.mxu0 %v126
    %186 = vmatpush.msra.mxu0 %v122
    %187 = vmatpush.msra.mxu0 %v118
    %188 = vmatpush.msra.mxu0 %v114
    %189 = vmatpush.msra.mxu0 %v110
    %190 = vmatpush.msra.mxu0 %v106
    %191 = vmatpush.msra.mxu0 %v102
    %192 = vmatpush.msra.mxu0 %v98
    %193 = vmatpush.msra.mxu0 %v94
    %194 = vmatpush.msra.mxu0 %v90
    %195 = vmatmul.f32.gmra.mxu0 %v153
    %v196 = vpop.f32.mrf.mxu0
    %v197 = vadd.f32 0.0, %v196
    %198 = vdwg.mxu0
    %199 = vmatpush.msra.mxu0 %v151
    %200 = vmatpush.msra.mxu0 %v147
    %201 = vmatpush.msra.mxu0 %v143
    %202 = vmatpush.msra.mxu0 %v139
    %203 = vmatpush.msra.mxu0 %v135
    %204 = vmatpush.msra.mxu0 %v131
    %205 = vmatpush.msra.mxu0 %v127
    %206 = vmatpush.msra.mxu0 %v123
    %207 = vmatpush.msra.mxu0 %v119
    %208 = vmatpush.msra.mxu0 %v115
    %209 = vmatpush.msra.mxu0 %v111
    %210 = vmatpush.msra.mxu0 %v107
    %211 = vmatpush.msra.mxu0 %v103
    %212 = vmatpush.msra.mxu0 %v99
    %213 = vmatpush.msra.mxu0 %v95
    %214 = vmatpush.msra.mxu0 %v91
    %215 = vmatmul.f32.gmra.mxu0 %v153
    %v216 = vpop.f32.mrf.mxu0
    %v217 = vadd.f32 0.0, %v216
    %218 = vdwg.mxu0
    %219 = vmatpush.msra.mxu0 %v152
    %220 = vmatpush.msra.mxu0 %v148
    %221 = vmatpush.msra.mxu0 %v144
    %222 = vmatpush.msra.mxu0 %v140
    %223 = vmatpush.msra.mxu0 %v136
    %224 = vmatpush.msra.mxu0 %v132
    %225 = vmatpush.msra.mxu0 %v128
    %226 = vmatpush.msra.mxu0 %v124
    %227 = vmatpush.msra.mxu0 %v120
    %228 = vmatpush.msra.mxu0 %v116
    %229 = vmatpush.msra.mxu0 %v112
    %230 = vmatpush.msra.mxu0 %v108
    %231 = vmatpush.msra.mxu0 %v104
    %232 = vmatpush.msra.mxu0 %v100
    %233 = vmatpush.msra.mxu0 %v96
    %234 = vmatpush.msra.mxu0 %v92
    %235 = vmatmul.f32.gmra.mxu0 %v153
    %v236 = vpop.f32.mrf.mxu0
    %v237 = vadd.f32 0.0, %v236
    %238 = vdwg.mxu0
    %v239 = vadd.f32 %v155, %v177
    %v240 = vadd.f32 %v156, %v197
    %v241 = vadd.f32 %v157, %v217
    %v242 = vadd.f32 %v158, %v237
    %v243 = vxor.u32 %v239, 2147483648
    %v244 = vmul.f32 %v243, 1.442695
    %v245 = vpow.pop %v244
    %v246 = vadd.f32 %v245, 1.0
    %v247 = vrcp.pop %v246
    %v248 = vmul.f32 %v246, %v247
    %v249 = vsub.f32 1.0, %v248
    %v250 = vmul.f32 %v247, %v249
    %v251 = vadd.f32 %v247, %v250
    %vm252 = vweird.f32 %v246
    %vm253 = vweird.f32 %v247
    %vm254 = vmor %vm252, %vm253
    %v255 = vsel %vm254, %v247, %v251
    %v256 = vand.u32 2147483647, %v246
    %vm257 = vcmp.eq.f32.partialorder %v256, 8.507059e+37
    %v258 = vand.u32 %v246, 2147483648
    %v259 = vor.u32 1.1754944e-38, %v258
    %v260 = vsel %vm257, %v259, %v255
    %v261 = vmul.f32 1.0, %v260
    %v262 = vxor.u32 %v240, 2147483648
    %v263 = vmul.f32 %v262, 1.442695
    %v264 = vpow.pop %v263
    %v265 = vadd.f32 %v264, 1.0
    %v266 = vrcp.pop %v265
    %v267 = vmul.f32 %v265, %v266
    %v268 = vsub.f32 1.0, %v267
    %v269 = vmul.f32 %v266, %v268
    %v270 = vadd.f32 %v266, %v269
    %vm271 = vweird.f32 %v265
    %vm272 = vweird.f32 %v266
    %vm273 = vmor %vm271, %vm272
    %v274 = vsel %vm273, %v266, %v270
    %v275 = vand.u32 2147483647, %v265
    %vm276 = vcmp.eq.f32.partialorder %v275, 8.507059e+37
    %v277 = vand.u32 %v265, 2147483648
    %v278 = vor.u32 1.1754944e-38, %v277
    %v279 = vsel %vm276, %v278, %v274
    %v280 = vmul.f32 1.0, %v279
    %v281 = vtanh.pop %v241
    %v282 = vxor.u32 %v242, 2147483648
    %v283 = vmul.f32 %v282, 1.442695
    %v284 = vpow.pop %v283
    %v285 = vadd.f32 %v284, 1.0
    %v286 = vrcp.pop %v285
    %v287 = vmul.f32 %v285, %v286
    %v288 = vsub.f32 1.0, %v287
    %v289 = vmul.f32 %v286, %v288
    %v290 = vadd.f32 %v286, %v289
    %vm291 = vweird.f32 %v285
    %vm292 = vweird.f32 %v286
    %vm293 = vmor %vm291, %vm292
    %v294 = vsel %vm293, %v286, %v290
    %v295 = vand.u32 2147483647, %v285
    %vm296 = vcmp.eq.f32.partialorder %v295, 8.507059e+37
    %v297 = vand.u32 %v285, 2147483648
    %v298 = vor.u32 1.1754944e-38, %v297
    %v299 = vsel %vm296, %v298, %v294
    %v300 = vmul.f32 1.0, %v299
    %v301 = vmul.f32 %v280, %v154
    %v302 = vmul.f32 %v261, %v281
    %v303 = vadd.f32 %v301, %v302
    %v304 = vtanh.pop %v303
    %v305 = vmul.f32 %v300, %v304
    %306 = vst [vmem:[#allocation4] sm:$0xff] %v305
    %s307 = scalar_lea.vmem [#allocation5], 32
    %v308 = vld [vmem:[%s307] sm:$0xff]
    %v309 = vld [vmem:[%s307 + $0x8] sm:$0xff]
    %v310 = vld [vmem:[%s307 + $0x10] sm:$0xff]
    %v311 = vld [vmem:[%s307 + $0x18] sm:$0xff]
    %312 = vmatpush.msra.mxu0 %v149
    %313 = vmatpush.msra.mxu0 %v145
    %314 = vmatpush.msra.mxu0 %v141
    %315 = vmatpush.msra.mxu0 %v137
    %316 = vmatpush.msra.mxu0 %v133
    %317 = vmatpush.msra.mxu0 %v129
    %318 = vmatpush.msra.mxu0 %v125
    %319 = vmatpush.msra.mxu0 %v121
    %320 = vmatpush.msra.mxu0 %v117
    %321 = vmatpush.msra.mxu0 %v113
    %322 = vmatpush.msra.mxu0 %v109
    %323 = vmatpush.msra.mxu0 %v105
    %324 = vmatpush.msra.mxu0 %v101
    %325 = vmatpush.msra.mxu0 %v97
    %326 = vmatpush.msra.mxu0 %v93
    %327 = vmatpush.msra.mxu0 %v89
    %328 = vmatmul.f32.gmra.mxu0 %v305
    %v329 = vpop.f32.mrf.mxu0
    %v330 = vadd.f32 0.0, %v329
    %331 = vdwg.mxu0
    %332 = vmatpush.msra.mxu0 %v150
    %333 = vmatpush.msra.mxu0 %v146
    %334 = vmatpush.msra.mxu0 %v142
    %335 = vmatpush.msra.mxu0 %v138
    %336 = vmatpush.msra.mxu0 %v134
    %337 = vmatpush.msra.mxu0 %v130
    %338 = vmatpush.msra.mxu0 %v126
    %339 = vmatpush.msra.mxu0 %v122
    %340 = vmatpush.msra.mxu0 %v118
    %341 = vmatpush.msra.mxu0 %v114
    %342 = vmatpush.msra.mxu0 %v110
    %343 = vmatpush.msra.mxu0 %v106
    %344 = vmatpush.msra.mxu0 %v102
    %345 = vmatpush.msra.mxu0 %v98
    %346 = vmatpush.msra.mxu0 %v94
    %347 = vmatpush.msra.mxu0 %v90
    %348 = vmatmul.f32.gmra.mxu0 %v305
    %v349 = vpop.f32.mrf.mxu0
    %v350 = vadd.f32 0.0, %v349
    %351 = vdwg.mxu0
    %352 = vmatpush.msra.mxu0 %v151
    %353 = vmatpush.msra.mxu0 %v147
    %354 = vmatpush.msra.mxu0 %v143
    %355 = vmatpush.msra.mxu0 %v139
    %356 = vmatpush.msra.mxu0 %v135
    %357 = vmatpush.msra.mxu0 %v131
    %358 = vmatpush.msra.mxu0 %v127
    %359 = vmatpush.msra.mxu0 %v123
    %360 = vmatpush.msra.mxu0 %v119
    %361 = vmatpush.msra.mxu0 %v115
    %362 = vmatpush.msra.mxu0 %v111
    %363 = vmatpush.msra.mxu0 %v107
    %364 = vmatpush.msra.mxu0 %v103
    %365 = vmatpush.msra.mxu0 %v99
    %366 = vmatpush.msra.mxu0 %v95
    %367 = vmatpush.msra.mxu0 %v91
    %368 = vmatmul.f32.gmra.mxu0 %v305
    %v369 = vpop.f32.mrf.mxu0
    %v370 = vadd.f32 0.0, %v369
    %371 = vdwg.mxu0
    %372 = vmatpush.msra.mxu0 %v152
    %373 = vmatpush.msra.mxu0 %v148
    %374 = vmatpush.msra.mxu0 %v144
    %375 = vmatpush.msra.mxu0 %v140
    %376 = vmatpush.msra.mxu0 %v136
    %377 = vmatpush.msra.mxu0 %v132
    %378 = vmatpush.msra.mxu0 %v128
    %379 = vmatpush.msra.mxu0 %v124
    %380 = vmatpush.msra.mxu0 %v120
    %381 = vmatpush.msra.mxu0 %v116
    %382 = vmatpush.msra.mxu0 %v112
    %383 = vmatpush.msra.mxu0 %v108
    %384 = vmatpush.msra.mxu0 %v104
    %385 = vmatpush.msra.mxu0 %v100
    %386 = vmatpush.msra.mxu0 %v96
    %387 = vmatpush.msra.mxu0 %v92
    %388 = vmatmul.f32.gmra.mxu0 %v305
    %v389 = vpop.f32.mrf.mxu0
    %v390 = vadd.f32 0.0, %v389
    %391 = vdwg.mxu0
    %v392 = vadd.f32 %v308, %v330
    %v393 = vadd.f32 %v309, %v350
    %v394 = vadd.f32 %v310, %v370
    %v395 = vadd.f32 %v311, %v390
    %v396 = vxor.u32 %v392, 2147483648
    %v397 = vmul.f32 %v396, 1.442695
    %v398 = vpow.pop %v397
    %v399 = vadd.f32 %v398, 1.0
    %v400 = vrcp.pop %v399
    %v401 = vmul.f32 %v399, %v400
    %v402 = vsub.f32 1.0, %v401
    %v403 = vmul.f32 %v400, %v402
    %v404 = vadd.f32 %v400, %v403
    %vm405 = vweird.f32 %v399
    %vm406 = vweird.f32 %v400
    %vm407 = vmor %vm405, %vm406
    %v408 = vsel %vm407, %v400, %v404
    %v409 = vand.u32 2147483647, %v399
    %vm410 = vcmp.eq.f32.partialorder %v409, 8.507059e+37
    %v411 = vand.u32 %v399, 2147483648
    %v412 = vor.u32 1.1754944e-38, %v411
    %v413 = vsel %vm410, %v412, %v408
    %v414 = vmul.f32 1.0, %v413
    %v415 = vxor.u32 %v393, 2147483648
    %v416 = vmul.f32 %v415, 1.442695
    %v417 = vpow.pop %v416
    %v418 = vadd.f32 %v417, 1.0
    %v419 = vrcp.pop %v418
    %v420 = vmul.f32 %v418, %v419
    %v421 = vsub.f32 1.0, %v420
    %v422 = vmul.f32 %v419, %v421
    %v423 = vadd.f32 %v419, %v422
    %vm424 = vweird.f32 %v418
    %vm425 = vweird.f32 %v419
    %vm426 = vmor %vm424, %vm425
    %v427 = vsel %vm426, %v419, %v423
    %v428 = vand.u32 2147483647, %v418
    %vm429 = vcmp.eq.f32.partialorder %v428, 8.507059e+37
    %v430 = vand.u32 %v418, 2147483648
    %v431 = vor.u32 1.1754944e-38, %v430
    %v432 = vsel %vm429, %v431, %v427
    %v433 = vmul.f32 1.0, %v432
    %v434 = vtanh.pop %v394
    %v435 = vxor.u32 %v395, 2147483648
    %v436 = vmul.f32 %v435, 1.442695
    %v437 = vpow.pop %v436
    %v438 = vadd.f32 %v437, 1.0
    %v439 = vrcp.pop %v438
    %v440 = vmul.f32 %v438, %v439
    %v441 = vsub.f32 1.0, %v440
    %v442 = vmul.f32 %v439, %v441
    %v443 = vadd.f32 %v439, %v442
    %vm444 = vweird.f32 %v438
    %vm445 = vweird.f32 %v439
    %vm446 = vmor %vm444, %vm445
    %v447 = vsel %vm446, %v439, %v443
    %v448 = vand.u32 2147483647, %v438
    %vm449 = vcmp.eq.f32.partialorder %v448, 8.507059e+37
    %v450 = vand.u32 %v438, 2147483648
    %v451 = vor.u32 1.1754944e-38, %v450
    %v452 = vsel %vm449, %v451, %v447
    %v453 = vmul.f32 1.0, %v452
    %v454 = vmul.f32 %v433, %v303
    %v455 = vmul.f32 %v414, %v434
    %v456 = vadd.f32 %v454, %v455
    %v457 = vtanh.pop %v456
    %v458 = vmul.f32 %v453, %v457
    %s459 = scalar_lea.vmem [#allocation4], 8
    %460 = vst [vmem:[%s459] sm:$0xff] %v458
    %s461 = scalar_lea.vmem [#allocation5], 64
    %v462 = vld [vmem:[%s461] sm:$0xff]
    %v463 = vld [vmem:[%s461 + $0x8] sm:$0xff]
    %v464 = vld [vmem:[%s461 + $0x10] sm:$0xff]
    %v465 = vld [vmem:[%s461 + $0x18] sm:$0xff]
    %466 = vmatpush.msra.mxu0 %v149
    %467 = vmatpush.msra.mxu0 %v145
    %468 = vmatpush.msra.mxu0 %v141
    %469 = vmatpush.msra.mxu0 %v137
    %470 = vmatpush.msra.mxu0 %v133
    %471 = vmatpush.msra.mxu0 %v129
    %472 = vmatpush.msra.mxu0 %v125
    %473 = vmatpush.msra.mxu0 %v121
    %474 = vmatpush.msra.mxu0 %v117
    %475 = vmatpush.msra.mxu0 %v113
    %476 = vmatpush.msra.mxu0 %v109
    %477 = vmatpush.msra.mxu0 %v105
    %478 = vmatpush.msra.mxu0 %v101
    %479 = vmatpush.msra.mxu0 %v97
    %480 = vmatpush.msra.mxu0 %v93
    %481 = vmatpush.msra.mxu0 %v89
    %482 = vmatmul.f32.gmra.mxu0 %v458
    %v483 = vpop.f32.mrf.mxu0
    %v484 = vadd.f32 0.0, %v483
    %485 = vdwg.mxu0
    %486 = vmatpush.msra.mxu0 %v150
    %487 = vmatpush.msra.mxu0 %v146
    %488 = vmatpush.msra.mxu0 %v142
    %489 = vmatpush.msra.mxu0 %v138
    %490 = vmatpush.msra.mxu0 %v134
    %491 = vmatpush.msra.mxu0 %v130
    %492 = vmatpush.msra.mxu0 %v126
    %493 = vmatpush.msra.mxu0 %v122
    %494 = vmatpush.msra.mxu0 %v118
    %495 = vmatpush.msra.mxu0 %v114
    %496 = vmatpush.msra.mxu0 %v110
    %497 = vmatpush.msra.mxu0 %v106
    %498 = vmatpush.msra.mxu0 %v102
    %499 = vmatpush.msra.mxu0 %v98
    %500 = vmatpush.msra.mxu0 %v94
    %501 = vmatpush.msra.mxu0 %v90
    %502 = vmatmul.f32.gmra.mxu0 %v458
    %v503 = vpop.f32.mrf.mxu0
    %v504 = vadd.f32 0.0, %v503
    %505 = vdwg.mxu0
    %506 = vmatpush.msra.mxu0 %v151
    %507 = vmatpush.msra.mxu0 %v147
    %508 = vmatpush.msra.mxu0 %v143
    %509 = vmatpush.msra.mxu0 %v139
    %510 = vmatpush.msra.mxu0 %v135
    %511 = vmatpush.msra.mxu0 %v131
    %512 = vmatpush.msra.mxu0 %v127
    %513 = vmatpush.msra.mxu0 %v123
    %514 = vmatpush.msra.mxu0 %v119
    %515 = vmatpush.msra.mxu0 %v115
    %516 = vmatpush.msra.mxu0 %v111
    %517 = vmatpush.msra.mxu0 %v107
    %518 = vmatpush.msra.mxu0 %v103
    %519 = vmatpush.msra.mxu0 %v99
    %520 = vmatpush.msra.mxu0 %v95
    %521 = vmatpush.msra.mxu0 %v91
    %522 = vmatmul.f32.gmra.mxu0 %v458
    %v523 = vpop.f32.mrf.mxu0
    %v524 = vadd.f32 0.0, %v523
    %525 = vdwg.mxu0
    %526 = vmatpush.msra.mxu0 %v152
    %527 = vmatpush.msra.mxu0 %v148
    %528 = vmatpush.msra.mxu0 %v144
    %529 = vmatpush.msra.mxu0 %v140
    %530 = vmatpush.msra.mxu0 %v136
    %531 = vmatpush.msra.mxu0 %v132
    %532 = vmatpush.msra.mxu0 %v128
    %533 = vmatpush.msra.mxu0 %v124
    %534 = vmatpush.msra.mxu0 %v120
    %535 = vmatpush.msra.mxu0 %v116
    %536 = vmatpush.msra.mxu0 %v112
    %537 = vmatpush.msra.mxu0 %v108
    %538 = vmatpush.msra.mxu0 %v104
    %539 = vmatpush.msra.mxu0 %v100
    %540 = vmatpush.msra.mxu0 %v96
    %541 = vmatpush.msra.mxu0 %v92
    %542 = vmatmul.f32.gmra.mxu0 %v458
    %v543 = vpop.f32.mrf.mxu0
    %v544 = vadd.f32 0.0, %v543
    %545 = vdwg.mxu0
    %v546 = vadd.f32 %v462, %v484
    %v547 = vadd.f32 %v463, %v504
    %v548 = vadd.f32 %v464, %v524
    %v549 = vadd.f32 %v465, %v544
    %v550 = vxor.u32 %v546, 2147483648
    %v551 = vmul.f32 %v550, 1.442695
    %v552 = vpow.pop %v551
    %v553 = vadd.f32 %v552, 1.0
    %v554 = vrcp.pop %v553
    %v555 = vmul.f32 %v553, %v554
    %v556 = vsub.f32 1.0, %v555
    %v557 = vmul.f32 %v554, %v556
    %v558 = vadd.f32 %v554, %v557
    %vm559 = vweird.f32 %v553
    %vm560 = vweird.f32 %v554
    %vm561 = vmor %vm559, %vm560
    %v562 = vsel %vm561, %v554, %v558
    %v563 = vand.u32 2147483647, %v553
    %vm564 = vcmp.eq.f32.partialorder %v563, 8.507059e+37
    %v565 = vand.u32 %v553, 2147483648
    %v566 = vor.u32 1.1754944e-38, %v565
    %v567 = vsel %vm564, %v566, %v562
    %v568 = vmul.f32 1.0, %v567
    %v569 = vxor.u32 %v547, 2147483648
    %v570 = vmul.f32 %v569, 1.442695
    %v571 = vpow.pop %v570
    %v572 = vadd.f32 %v571, 1.0
    %v573 = vrcp.pop %v572
    %v574 = vmul.f32 %v572, %v573
    %v575 = vsub.f32 1.0, %v574
    %v576 = vmul.f32 %v573, %v575
    %v577 = vadd.f32 %v573, %v576
    %vm578 = vweird.f32 %v572
    %vm579 = vweird.f32 %v573
    %vm580 = vmor %vm578, %vm579
    %v581 = vsel %vm580, %v573, %v577
    %v582 = vand.u32 2147483647, %v572
    %vm583 = vcmp.eq.f32.partialorder %v582, 8.507059e+37
    %v584 = vand.u32 %v572, 2147483648
    %v585 = vor.u32 1.1754944e-38, %v584
    %v586 = vsel %vm583, %v585, %v581
    %v587 = vmul.f32 1.0, %v586
    %v588 = vtanh.pop %v548
    %v589 = vxor.u32 %v549, 2147483648
    %v590 = vmul.f32 %v589, 1.442695
    %v591 = vpow.pop %v590
    %v592 = vadd.f32 %v591, 1.0
    %v593 = vrcp.pop %v592
    %v594 = vmul.f32 %v592, %v593
    %v595 = vsub.f32 1.0, %v594
    %v596 = vmul.f32 %v593, %v595
    %v597 = vadd.f32 %v593, %v596
    %vm598 = vweird.f32 %v592
    %vm599 = vweird.f32 %v593
    %vm600 = vmor %vm598, %vm599
    %v601 = vsel %vm600, %v593, %v597
    %v602 = vand.u32 2147483647, %v592
    %vm603 = vcmp.eq.f32.partialorder %v602, 8.507059e+37
    %v604 = vand.u32 %v592, 2147483648
    %v605 = vor.u32 1.1754944e-38, %v604
    %v606 = vsel %vm603, %v605, %v601
    %v607 = vmul.f32 1.0, %v606
    %v608 = vmul.f32 %v587, %v456
    %v609 = vmul.f32 %v568, %v588
    %v610 = vadd.f32 %v608, %v609
    %v611 = vtanh.pop %v610
    %v612 = vmul.f32 %v607, %v611
    %s613 = scalar_lea.vmem [#allocation4], 16
    %614 = vst [vmem:[%s613] sm:$0xff] %v612
    %s615 = scalar_lea.vmem [#allocation5], 96
    %v616 = vld [vmem:[%s615] sm:$0xff]
    %v617 = vld [vmem:[%s615 + $0x8] sm:$0xff]
    %v618 = vld [vmem:[%s615 + $0x10] sm:$0xff]
    %v619 = vld [vmem:[%s615 + $0x18] sm:$0xff]
    %620 = vmatpush.msra.mxu0 %v149
    %621 = vmatpush.msra.mxu0 %v145
    %622 = vmatpush.msra.mxu0 %v141
    %623 = vmatpush.msra.mxu0 %v137
    %624 = vmatpush.msra.mxu0 %v133
    %625 = vmatpush.msra.mxu0 %v129
    %626 = vmatpush.msra.mxu0 %v125
    %627 = vmatpush.msra.mxu0 %v121
    %628 = vmatpush.msra.mxu0 %v117
    %629 = vmatpush.msra.mxu0 %v113
    %630 = vmatpush.msra.mxu0 %v109
    %631 = vmatpush.msra.mxu0 %v105
    %632 = vmatpush.msra.mxu0 %v101
    %633 = vmatpush.msra.mxu0 %v97
    %634 = vmatpush.msra.mxu0 %v93
    %635 = vmatpush.msra.mxu0 %v89
    %636 = vmatmul.f32.gmra.mxu0 %v612
    %v637 = vpop.f32.mrf.mxu0
    %v638 = vadd.f32 0.0, %v637
    %639 = vdwg.mxu0
    %640 = vmatpush.msra.mxu0 %v150
    %641 = vmatpush.msra.mxu0 %v146
    %642 = vmatpush.msra.mxu0 %v142
    %643 = vmatpush.msra.mxu0 %v138
    %644 = vmatpush.msra.mxu0 %v134
    %645 = vmatpush.msra.mxu0 %v130
    %646 = vmatpush.msra.mxu0 %v126
    %647 = vmatpush.msra.mxu0 %v122
    %648 = vmatpush.msra.mxu0 %v118
    %649 = vmatpush.msra.mxu0 %v114
    %650 = vmatpush.msra.mxu0 %v110
    %651 = vmatpush.msra.mxu0 %v106
    %652 = vmatpush.msra.mxu0 %v102
    %653 = vmatpush.msra.mxu0 %v98
    %654 = vmatpush.msra.mxu0 %v94
    %655 = vmatpush.msra.mxu0 %v90
    %656 = vmatmul.f32.gmra.mxu0 %v612
    %v657 = vpop.f32.mrf.mxu0
    %v658 = vadd.f32 0.0, %v657
    %659 = vdwg.mxu0
    %660 = vmatpush.msra.mxu0 %v151
    %661 = vmatpush.msra.mxu0 %v147
    %662 = vmatpush.msra.mxu0 %v143
    %663 = vmatpush.msra.mxu0 %v139
    %664 = vmatpush.msra.mxu0 %v135
    %665 = vmatpush.msra.mxu0 %v131
    %666 = vmatpush.msra.mxu0 %v127
    %667 = vmatpush.msra.mxu0 %v123
    %668 = vmatpush.msra.mxu0 %v119
    %669 = vmatpush.msra.mxu0 %v115
    %670 = vmatpush.msra.mxu0 %v111
    %671 = vmatpush.msra.mxu0 %v107
    %672 = vmatpush.msra.mxu0 %v103
    %673 = vmatpush.msra.mxu0 %v99
    %674 = vmatpush.msra.mxu0 %v95
    %675 = vmatpush.msra.mxu0 %v91
    %676 = vmatmul.f32.gmra.mxu0 %v612
    %v677 = vpop.f32.mrf.mxu0
    %v678 = vadd.f32 0.0, %v677
    %679 = vdwg.mxu0
    %680 = vmatpush.msra.mxu0 %v152
    %681 = vmatpush.msra.mxu0 %v148
    %682 = vmatpush.msra.mxu0 %v144
    %683 = vmatpush.msra.mxu0 %v140
    %684 = vmatpush.msra.mxu0 %v136
    %685 = vmatpush.msra.mxu0 %v132
    %686 = vmatpush.msra.mxu0 %v128
    %687 = vmatpush.msra.mxu0 %v124
    %688 = vmatpush.msra.mxu0 %v120
    %689 = vmatpush.msra.mxu0 %v116
    %690 = vmatpush.msra.mxu0 %v112
    %691 = vmatpush.msra.mxu0 %v108
    %692 = vmatpush.msra.mxu0 %v104
    %693 = vmatpush.msra.mxu0 %v100
    %694 = vmatpush.msra.mxu0 %v96
    %695 = vmatpush.msra.mxu0 %v92
    %696 = vmatmul.f32.gmra.mxu0 %v612
    %v697 = vpop.f32.mrf.mxu0
    %v698 = vadd.f32 0.0, %v697
    %699 = vdwg.mxu0
    %v700 = vadd.f32 %v616, %v638
    %v701 = vadd.f32 %v617, %v658
    %v702 = vadd.f32 %v618, %v678
    %v703 = vadd.f32 %v619, %v698
    %v704 = vxor.u32 %v700, 2147483648
    %v705 = vmul.f32 %v704, 1.442695
    %v706 = vpow.pop %v705
    %v707 = vadd.f32 %v706, 1.0
    %v708 = vrcp.pop %v707
    %v709 = vmul.f32 %v707, %v708
    %v710 = vsub.f32 1.0, %v709
    %v711 = vmul.f32 %v708, %v710
    %v712 = vadd.f32 %v708, %v711
    %vm713 = vweird.f32 %v707
    %vm714 = vweird.f32 %v708
    %vm715 = vmor %vm713, %vm714
    %v716 = vsel %vm715, %v708, %v712
    %v717 = vand.u32 2147483647, %v707
    %vm718 = vcmp.eq.f32.partialorder %v717, 8.507059e+37
    %v719 = vand.u32 %v707, 2147483648
    %v720 = vor.u32 1.1754944e-38, %v719
    %v721 = vsel %vm718, %v720, %v716
    %v722 = vmul.f32 1.0, %v721
    %v723 = vxor.u32 %v701, 2147483648
    %v724 = vmul.f32 %v723, 1.442695
    %v725 = vpow.pop %v724
    %v726 = vadd.f32 %v725, 1.0
    %v727 = vrcp.pop %v726
    %v728 = vmul.f32 %v726, %v727
    %v729 = vsub.f32 1.0, %v728
    %v730 = vmul.f32 %v727, %v729
    %v731 = vadd.f32 %v727, %v730
    %vm732 = vweird.f32 %v726
    %vm733 = vweird.f32 %v727
    %vm734 = vmor %vm732, %vm733
    %v735 = vsel %vm734, %v727, %v731
    %v736 = vand.u32 2147483647, %v726
    %vm737 = vcmp.eq.f32.partialorder %v736, 8.507059e+37
    %v738 = vand.u32 %v726, 2147483648
    %v739 = vor.u32 1.1754944e-38, %v738
    %v740 = vsel %vm737, %v739, %v735
    %v741 = vmul.f32 1.0, %v740
    %v742 = vtanh.pop %v702
    %v743 = vxor.u32 %v703, 2147483648
    %v744 = vmul.f32 %v743, 1.442695
    %v745 = vpow.pop %v744
    %v746 = vadd.f32 %v745, 1.0
    %v747 = vrcp.pop %v746
    %v748 = vmul.f32 %v746, %v747
    %v749 = vsub.f32 1.0, %v748
    %v750 = vmul.f32 %v747, %v749
    %v751 = vadd.f32 %v747, %v750
    %vm752 = vweird.f32 %v746
    %vm753 = vweird.f32 %v747
    %vm754 = vmor %vm752, %vm753
    %v755 = vsel %vm754, %v747, %v751
    %v756 = vand.u32 2147483647, %v746
    %vm757 = vcmp.eq.f32.partialorder %v756, 8.507059e+37
    %v758 = vand.u32 %v746, 2147483648
    %v759 = vor.u32 1.1754944e-38, %v758
    %v760 = vsel %vm757, %v759, %v755
    %v761 = vmul.f32 1.0, %v760
    %v762 = vmul.f32 %v741, %v610
    %v763 = vmul.f32 %v722, %v742
    %v764 = vadd.f32 %v762, %v763
    %v765 = vtanh.pop %v764
    %v766 = vmul.f32 %v761, %v765
    %s767 = scalar_lea.vmem [#allocation4], 24
    %768 = vst [vmem:[%s767] sm:$0xff] %v766
    %s769 = scalar_lea.vmem [#allocation5], 128
    %v770 = vld [vmem:[%s769] sm:$0xff]
    %v771 = vld [vmem:[%s769 + $0x8] sm:$0xff]
    %v772 = vld [vmem:[%s769 + $0x10] sm:$0xff]
    %v773 = vld [vmem:[%s769 + $0x18] sm:$0xff]
    %774 = vmatpush.msra.mxu0 %v149
    %775 = vmatpush.msra.mxu0 %v145
    %776 = vmatpush.msra.mxu0 %v141
    %777 = vmatpush.msra.mxu0 %v137
    %778 = vmatpush.msra.mxu0 %v133
    %779 = vmatpush.msra.mxu0 %v129
    %780 = vmatpush.msra.mxu0 %v125
    %781 = vmatpush.msra.mxu0 %v121
    %782 = vmatpush.msra.mxu0 %v117
    %783 = vmatpush.msra.mxu0 %v113
    %784 = vmatpush.msra.mxu0 %v109
    %785 = vmatpush.msra.mxu0 %v105
    %786 = vmatpush.msra.mxu0 %v101
    %787 = vmatpush.msra.mxu0 %v97
    %788 = vmatpush.msra.mxu0 %v93
    %789 = vmatpush.msra.mxu0 %v89
    %790 = vmatmul.f32.gmra.mxu0 %v766
    %v791 = vpop.f32.mrf.mxu0
    %v792 = vadd.f32 0.0, %v791
    %793 = vdwg.mxu0
    %794 = vmatpush.msra.mxu0 %v150
    %795 = vmatpush.msra.mxu0 %v146
    %796 = vmatpush.msra.mxu0 %v142
    %797 = vmatpush.msra.mxu0 %v138
    %798 = vmatpush.msra.mxu0 %v134
    %799 = vmatpush.msra.mxu0 %v130
    %800 = vmatpush.msra.mxu0 %v126
    %801 = vmatpush.msra.mxu0 %v122
    %802 = vmatpush.msra.mxu0 %v118
    %803 = vmatpush.msra.mxu0 %v114
    %804 = vmatpush.msra.mxu0 %v110
    %805 = vmatpush.msra.mxu0 %v106
    %806 = vmatpush.msra.mxu0 %v102
    %807 = vmatpush.msra.mxu0 %v98
    %808 = vmatpush.msra.mxu0 %v94
    %809 = vmatpush.msra.mxu0 %v90
    %810 = vmatmul.f32.gmra.mxu0 %v766
    %v811 = vpop.f32.mrf.mxu0
    %v812 = vadd.f32 0.0, %v811
    %813 = vdwg.mxu0
    %814 = vmatpush.msra.mxu0 %v151
    %815 = vmatpush.msra.mxu0 %v147
    %816 = vmatpush.msra.mxu0 %v143
    %817 = vmatpush.msra.mxu0 %v139
    %818 = vmatpush.msra.mxu0 %v135
    %819 = vmatpush.msra.mxu0 %v131
    %820 = vmatpush.msra.mxu0 %v127
    %821 = vmatpush.msra.mxu0 %v123
    %822 = vmatpush.msra.mxu0 %v119
    %823 = vmatpush.msra.mxu0 %v115
    %824 = vmatpush.msra.mxu0 %v111
    %825 = vmatpush.msra.mxu0 %v107
    %826 = vmatpush.msra.mxu0 %v103
    %827 = vmatpush.msra.mxu0 %v99
    %828 = vmatpush.msra.mxu0 %v95
    %829 = vmatpush.msra.mxu0 %v91
    %830 = vmatmul.f32.gmra.mxu0 %v766
    %v831 = vpop.f32.mrf.mxu0
    %v832 = vadd.f32 0.0, %v831
    %833 = vdwg.mxu0
    %834 = vmatpush.msra.mxu0 %v152
    %835 = vmatpush.msra.mxu0 %v148
    %836 = vmatpush.msra.mxu0 %v144
    %837 = vmatpush.msra.mxu0 %v140
    %838 = vmatpush.msra.mxu0 %v136
    %839 = vmatpush.msra.mxu0 %v132
    %840 = vmatpush.msra.mxu0 %v128
    %841 = vmatpush.msra.mxu0 %v124
    %842 = vmatpush.msra.mxu0 %v120
    %843 = vmatpush.msra.mxu0 %v116
    %844 = vmatpush.msra.mxu0 %v112
    %845 = vmatpush.msra.mxu0 %v108
    %846 = vmatpush.msra.mxu0 %v104
    %847 = vmatpush.msra.mxu0 %v100
    %848 = vmatpush.msra.mxu0 %v96
    %849 = vmatpush.msra.mxu0 %v92
    %850 = vmatmul.f32.gmra.mxu0 %v766
    %v851 = vpop.f32.mrf.mxu0
    %v852 = vadd.f32 0.0, %v851
    %853 = vdwg.mxu0
    %v854 = vadd.f32 %v770, %v792
    %v855 = vadd.f32 %v771, %v812
    %v856 = vadd.f32 %v772, %v832
    %v857 = vadd.f32 %v773, %v852
    %v858 = vxor.u32 %v854, 2147483648
    %v859 = vmul.f32 %v858, 1.442695
    %v860 = vpow.pop %v859
    %v861 = vadd.f32 %v860, 1.0
    %v862 = vrcp.pop %v861
    %v863 = vmul.f32 %v861, %v862
    %v864 = vsub.f32 1.0, %v863
    %v865 = vmul.f32 %v862, %v864
    %v866 = vadd.f32 %v862, %v865
    %vm867 = vweird.f32 %v861
    %vm868 = vweird.f32 %v862
    %vm869 = vmor %vm867, %vm868
    %v870 = vsel %vm869, %v862, %v866
    %v871 = vand.u32 2147483647, %v861
    %vm872 = vcmp.eq.f32.partialorder %v871, 8.507059e+37
    %v873 = vand.u32 %v861, 2147483648
    %v874 = vor.u32 1.1754944e-38, %v873
    %v875 = vsel %vm872, %v874, %v870
    %v876 = vmul.f32 1.0, %v875
    %v877 = vxor.u32 %v855, 2147483648
    %v878 = vmul.f32 %v877, 1.442695
    %v879 = vpow.pop %v878
    %v880 = vadd.f32 %v879, 1.0
    %v881 = vrcp.pop %v880
    %v882 = vmul.f32 %v880, %v881
    %v883 = vsub.f32 1.0, %v882
    %v884 = vmul.f32 %v881, %v883
    %v885 = vadd.f32 %v881, %v884
    %vm886 = vweird.f32 %v880
    %vm887 = vweird.f32 %v881
    %vm888 = vmor %vm886, %vm887
    %v889 = vsel %vm888, %v881, %v885
    %v890 = vand.u32 2147483647, %v880
    %vm891 = vcmp.eq.f32.partialorder %v890, 8.507059e+37
    %v892 = vand.u32 %v880, 2147483648
    %v893 = vor.u32 1.1754944e-38, %v892
    %v894 = vsel %vm891, %v893, %v889
    %v895 = vmul.f32 1.0, %v894
    %v896 = vtanh.pop %v856
    %v897 = vxor.u32 %v857, 2147483648
    %v898 = vmul.f32 %v897, 1.442695
    %v899 = vpow.pop %v898
    %v900 = vadd.f32 %v899, 1.0
    %v901 = vrcp.pop %v900
    %v902 = vmul.f32 %v900, %v901
    %v903 = vsub.f32 1.0, %v902
    %v904 = vmul.f32 %v901, %v903
    %v905 = vadd.f32 %v901, %v904
    %vm906 = vweird.f32 %v900
    %vm907 = vweird.f32 %v901
    %vm908 = vmor %vm906, %vm907
    %v909 = vsel %vm908, %v901, %v905
    %v910 = vand.u32 2147483647, %v900
    %vm911 = vcmp.eq.f32.partialorder %v910, 8.507059e+37
    %v912 = vand.u32 %v900, 2147483648
    %v913 = vor.u32 1.1754944e-38, %v912
    %v914 = vsel %vm911, %v913, %v909
    %v915 = vmul.f32 1.0, %v914
    %v916 = vmul.f32 %v895, %v764
    %v917 = vmul.f32 %v876, %v896
    %v918 = vadd.f32 %v916, %v917
    %v919 = vtanh.pop %v918
    %v920 = vmul.f32 %v915, %v919
    %s921 = scalar_lea.vmem [#allocation4], 32
    %922 = vst [vmem:[%s921] sm:$0xff] %v920
    %s923 = scalar_lea.vmem [#allocation5], 160
    %v924 = vld [vmem:[%s923] sm:$0xff]
    %v925 = vld [vmem:[%s923 + $0x8] sm:$0xff]
    %v926 = vld [vmem:[%s923 + $0x10] sm:$0xff]
    %v927 = vld [vmem:[%s923 + $0x18] sm:$0xff]
    %928 = vmatpush.msra.mxu0 %v149
    %929 = vmatpush.msra.mxu0 %v145
    %930 = vmatpush.msra.mxu0 %v141
    %931 = vmatpush.msra.mxu0 %v137
    %932 = vmatpush.msra.mxu0 %v133
    %933 = vmatpush.msra.mxu0 %v129
    %934 = vmatpush.msra.mxu0 %v125
    %935 = vmatpush.msra.mxu0 %v121
    %936 = vmatpush.msra.mxu0 %v117
    %937 = vmatpush.msra.mxu0 %v113
    %938 = vmatpush.msra.mxu0 %v109
    %939 = vmatpush.msra.mxu0 %v105
    %940 = vmatpush.msra.mxu0 %v101
    %941 = vmatpush.msra.mxu0 %v97
    %942 = vmatpush.msra.mxu0 %v93
    %943 = vmatpush.msra.mxu0 %v89
    %944 = vmatmul.f32.gmra.mxu0 %v920
    %v945 = vpop.f32.mrf.mxu0
    %v946 = vadd.f32 0.0, %v945
    %947 = vdwg.mxu0
    %948 = vmatpush.msra.mxu0 %v150
    %949 = vmatpush.msra.mxu0 %v146
    %950 = vmatpush.msra.mxu0 %v142
    %951 = vmatpush.msra.mxu0 %v138
    %952 = vmatpush.msra.mxu0 %v134
    %953 = vmatpush.msra.mxu0 %v130
    %954 = vmatpush.msra.mxu0 %v126
    %955 = vmatpush.msra.mxu0 %v122
    %956 = vmatpush.msra.mxu0 %v118
    %957 = vmatpush.msra.mxu0 %v114
    %958 = vmatpush.msra.mxu0 %v110
    %959 = vmatpush.msra.mxu0 %v106
    %960 = vmatpush.msra.mxu0 %v102
    %961 = vmatpush.msra.mxu0 %v98
    %962 = vmatpush.msra.mxu0 %v94
    %963 = vmatpush.msra.mxu0 %v90
    %964 = vmatmul.f32.gmra.mxu0 %v920
    %v965 = vpop.f32.mrf.mxu0
    %v966 = vadd.f32 0.0, %v965
    %967 = vdwg.mxu0
    %968 = vmatpush.msra.mxu0 %v151
    %969 = vmatpush.msra.mxu0 %v147
    %970 = vmatpush.msra.mxu0 %v143
    %971 = vmatpush.msra.mxu0 %v139
    %972 = vmatpush.msra.mxu0 %v135
    %973 = vmatpush.msra.mxu0 %v131
    %974 = vmatpush.msra.mxu0 %v127
    %975 = vmatpush.msra.mxu0 %v123
    %976 = vmatpush.msra.mxu0 %v119
    %977 = vmatpush.msra.mxu0 %v115
    %978 = vmatpush.msra.mxu0 %v111
    %979 = vmatpush.msra.mxu0 %v107
    %980 = vmatpush.msra.mxu0 %v103
    %981 = vmatpush.msra.mxu0 %v99
    %982 = vmatpush.msra.mxu0 %v95
    %983 = vmatpush.msra.mxu0 %v91
    %984 = vmatmul.f32.gmra.mxu0 %v920
    %v985 = vpop.f32.mrf.mxu0
    %v986 = vadd.f32 0.0, %v985
    %987 = vdwg.mxu0
    %988 = vmatpush.msra.mxu0 %v152
    %989 = vmatpush.msra.mxu0 %v148
    %990 = vmatpush.msra.mxu0 %v144
    %991 = vmatpush.msra.mxu0 %v140
    %992 = vmatpush.msra.mxu0 %v136
    %993 = vmatpush.msra.mxu0 %v132
    %994 = vmatpush.msra.mxu0 %v128
    %995 = vmatpush.msra.mxu0 %v124
    %996 = vmatpush.msra.mxu0 %v120
    %997 = vmatpush.msra.mxu0 %v116
    %998 = vmatpush.msra.mxu0 %v112
    %999 = vmatpush.msra.mxu0 %v108
    %1000 = vmatpush.msra.mxu0 %v104
    %1001 = vmatpush.msra.mxu0 %v100
    %1002 = vmatpush.msra.mxu0 %v96
    %1003 = vmatpush.msra.mxu0 %v92
    %1004 = vmatmul.f32.gmra.mxu0 %v920
    %v1005 = vpop.f32.mrf.mxu0
    %v1006 = vadd.f32 0.0, %v1005
    %1007 = vdwg.mxu0
    %v1008 = vadd.f32 %v924, %v946
    %v1009 = vadd.f32 %v925, %v966
    %v1010 = vadd.f32 %v926, %v986
    %v1011 = vadd.f32 %v927, %v1006
    %v1012 = vxor.u32 %v1008, 2147483648
    %v1013 = vmul.f32 %v1012, 1.442695
    %v1014 = vpow.pop %v1013
    %v1015 = vadd.f32 %v1014, 1.0
    %v1016 = vrcp.pop %v1015
    %v1017 = vmul.f32 %v1015, %v1016
    %v1018 = vsub.f32 1.0, %v1017
    %v1019 = vmul.f32 %v1016, %v1018
    %v1020 = vadd.f32 %v1016, %v1019
    %vm1021 = vweird.f32 %v1015
    %vm1022 = vweird.f32 %v1016
    %vm1023 = vmor %vm1021, %vm1022
    %v1024 = vsel %vm1023, %v1016, %v1020
    %v1025 = vand.u32 2147483647, %v1015
    %vm1026 = vcmp.eq.f32.partialorder %v1025, 8.507059e+37
    %v1027 = vand.u32 %v1015, 2147483648
    %v1028 = vor.u32 1.1754944e-38, %v1027
    %v1029 = vsel %vm1026, %v1028, %v1024
    %v1030 = vmul.f32 1.0, %v1029
    %v1031 = vxor.u32 %v1009, 2147483648
    %v1032 = vmul.f32 %v1031, 1.442695
    %v1033 = vpow.pop %v1032
    %v1034 = vadd.f32 %v1033, 1.0
    %v1035 = vrcp.pop %v1034
    %v1036 = vmul.f32 %v1034, %v1035
    %v1037 = vsub.f32 1.0, %v1036
    %v1038 = vmul.f32 %v1035, %v1037
    %v1039 = vadd.f32 %v1035, %v1038
    %vm1040 = vweird.f32 %v1034
    %vm1041 = vweird.f32 %v1035
    %vm1042 = vmor %vm1040, %vm1041
    %v1043 = vsel %vm1042, %v1035, %v1039
    %v1044 = vand.u32 2147483647, %v1034
    %vm1045 = vcmp.eq.f32.partialorder %v1044, 8.507059e+37
    %v1046 = vand.u32 %v1034, 2147483648
    %v1047 = vor.u32 1.1754944e-38, %v1046
    %v1048 = vsel %vm1045, %v1047, %v1043
    %v1049 = vmul.f32 1.0, %v1048
    %v1050 = vtanh.pop %v1010
    %v1051 = vxor.u32 %v1011, 2147483648
    %v1052 = vmul.f32 %v1051, 1.442695
    %v1053 = vpow.pop %v1052
    %v1054 = vadd.f32 %v1053, 1.0
    %v1055 = vrcp.pop %v1054
    %v1056 = vmul.f32 %v1054, %v1055
    %v1057 = vsub.f32 1.0, %v1056
    %v1058 = vmul.f32 %v1055, %v1057
    %v1059 = vadd.f32 %v1055, %v1058
    %vm1060 = vweird.f32 %v1054
    %vm1061 = vweird.f32 %v1055
    %vm1062 = vmor %vm1060, %vm1061
    %v1063 = vsel %vm1062, %v1055, %v1059
    %v1064 = vand.u32 2147483647, %v1054
    %vm1065 = vcmp.eq.f32.partialorder %v1064, 8.507059e+37
    %v1066 = vand.u32 %v1054, 2147483648
    %v1067 = vor.u32 1.1754944e-38, %v1066
    %v1068 = vsel %vm1065, %v1067, %v1063
    %v1069 = vmul.f32 1.0, %v1068
    %v1070 = vmul.f32 %v1049, %v918
    %v1071 = vmul.f32 %v1030, %v1050
    %v1072 = vadd.f32 %v1070, %v1071
    %v1073 = vtanh.pop %v1072
    %v1074 = vmul.f32 %v1069, %v1073
    %s1075 = scalar_lea.vmem [#allocation4], 40
    %1076 = vst [vmem:[%s1075] sm:$0xff] %v1074
    %s1077 = scalar_lea.vmem [#allocation5], 192
    %v1078 = vld [vmem:[%s1077] sm:$0xff]
    %v1079 = vld [vmem:[%s1077 + $0x8] sm:$0xff]
    %v1080 = vld [vmem:[%s1077 + $0x10] sm:$0xff]
    %v1081 = vld [vmem:[%s1077 + $0x18] sm:$0xff]
    %1082 = vmatpush.msra.mxu0 %v149
    %1083 = vmatpush.msra.mxu0 %v145
    %1084 = vmatpush.msra.mxu0 %v141
    %1085 = vmatpush.msra.mxu0 %v137
    %1086 = vmatpush.msra.mxu0 %v133
    %1087 = vmatpush.msra.mxu0 %v129
    %1088 = vmatpush.msra.mxu0 %v125
    %1089 = vmatpush.msra.mxu0 %v121
    %1090 = vmatpush.msra.mxu0 %v117
    %1091 = vmatpush.msra.mxu0 %v113
    %1092 = vmatpush.msra.mxu0 %v109
    %1093 = vmatpush.msra.mxu0 %v105
    %1094 = vmatpush.msra.mxu0 %v101
    %1095 = vmatpush.msra.mxu0 %v97
    %1096 = vmatpush.msra.mxu0 %v93
    %1097 = vmatpush.msra.mxu0 %v89
    %1098 = vmatmul.f32.gmra.mxu0 %v1074
    %v1099 = vpop.f32.mrf.mxu0
    %v1100 = vadd.f32 0.0, %v1099
    %1101 = vdwg.mxu0
    %1102 = vmatpush.msra.mxu0 %v150
    %1103 = vmatpush.msra.mxu0 %v146
    %1104 = vmatpush.msra.mxu0 %v142
    %1105 = vmatpush.msra.mxu0 %v138
    %1106 = vmatpush.msra.mxu0 %v134
    %1107 = vmatpush.msra.mxu0 %v130
    %1108 = vmatpush.msra.mxu0 %v126
    %1109 = vmatpush.msra.mxu0 %v122
    %1110 = vmatpush.msra.mxu0 %v118
    %1111 = vmatpush.msra.mxu0 %v114
    %1112 = vmatpush.msra.mxu0 %v110
    %1113 = vmatpush.msra.mxu0 %v106
    %1114 = vmatpush.msra.mxu0 %v102
    %1115 = vmatpush.msra.mxu0 %v98
    %1116 = vmatpush.msra.mxu0 %v94
    %1117 = vmatpush.msra.mxu0 %v90
    %1118 = vmatmul.f32.gmra.mxu0 %v1074
    %v1119 = vpop.f32.mrf.mxu0
    %v1120 = vadd.f32 0.0, %v1119
    %1121 = vdwg.mxu0
    %1122 = vmatpush.msra.mxu0 %v151
    %1123 = vmatpush.msra.mxu0 %v147
    %1124 = vmatpush.msra.mxu0 %v143
    %1125 = vmatpush.msra.mxu0 %v139
    %1126 = vmatpush.msra.mxu0 %v135
    %1127 = vmatpush.msra.mxu0 %v131
    %1128 = vmatpush.msra.mxu0 %v127
    %1129 = vmatpush.msra.mxu0 %v123
    %1130 = vmatpush.msra.mxu0 %v119
    %1131 = vmatpush.msra.mxu0 %v115
    %1132 = vmatpush.msra.mxu0 %v111
    %1133 = vmatpush.msra.mxu0 %v107
    %1134 = vmatpush.msra.mxu0 %v103
    %1135 = vmatpush.msra.mxu0 %v99
    %1136 = vmatpush.msra.mxu0 %v95
    %1137 = vmatpush.msra.mxu0 %v91
    %1138 = vmatmul.f32.gmra.mxu0 %v1074
    %v1139 = vpop.f32.mrf.mxu0
    %v1140 = vadd.f32 0.0, %v1139
    %1141 = vdwg.mxu0
    %1142 = vmatpush.msra.mxu0 %v152
    %1143 = vmatpush.msra.mxu0 %v148
    %1144 = vmatpush.msra.mxu0 %v144
    %1145 = vmatpush.msra.mxu0 %v140
    %1146 = vmatpush.msra.mxu0 %v136
    %1147 = vmatpush.msra.mxu0 %v132
    %1148 = vmatpush.msra.mxu0 %v128
    %1149 = vmatpush.msra.mxu0 %v124
    %1150 = vmatpush.msra.mxu0 %v120
    %1151 = vmatpush.msra.mxu0 %v116
    %1152 = vmatpush.msra.mxu0 %v112
    %1153 = vmatpush.msra.mxu0 %v108
    %1154 = vmatpush.msra.mxu0 %v104
    %1155 = vmatpush.msra.mxu0 %v100
    %1156 = vmatpush.msra.mxu0 %v96
    %1157 = vmatpush.msra.mxu0 %v92
    %1158 = vmatmul.f32.gmra.mxu0 %v1074
    %v1159 = vpop.f32.mrf.mxu0
    %v1160 = vadd.f32 0.0, %v1159
    %1161 = vdwg.mxu0
    %v1162 = vadd.f32 %v1078, %v1100
    %v1163 = vadd.f32 %v1079, %v1120
    %v1164 = vadd.f32 %v1080, %v1140
    %v1165 = vadd.f32 %v1081, %v1160
    %v1166 = vxor.u32 %v1162, 2147483648
    %v1167 = vmul.f32 %v1166, 1.442695
    %v1168 = vpow.pop %v1167
    %v1169 = vadd.f32 %v1168, 1.0
    %v1170 = vrcp.pop %v1169
    %v1171 = vmul.f32 %v1169, %v1170
    %v1172 = vsub.f32 1.0, %v1171
    %v1173 = vmul.f32 %v1170, %v1172
    %v1174 = vadd.f32 %v1170, %v1173
    %vm1175 = vweird.f32 %v1169
    %vm1176 = vweird.f32 %v1170
    %vm1177 = vmor %vm1175, %vm1176
    %v1178 = vsel %vm1177, %v1170, %v1174
    %v1179 = vand.u32 2147483647, %v1169
    %vm1180 = vcmp.eq.f32.partialorder %v1179, 8.507059e+37
    %v1181 = vand.u32 %v1169, 2147483648
    %v1182 = vor.u32 1.1754944e-38, %v1181
    %v1183 = vsel %vm1180, %v1182, %v1178
    %v1184 = vmul.f32 1.0, %v1183
    %v1185 = vxor.u32 %v1163, 2147483648
    %v1186 = vmul.f32 %v1185, 1.442695
    %v1187 = vpow.pop %v1186
    %v1188 = vadd.f32 %v1187, 1.0
    %v1189 = vrcp.pop %v1188
    %v1190 = vmul.f32 %v1188, %v1189
    %v1191 = vsub.f32 1.0, %v1190
    %v1192 = vmul.f32 %v1189, %v1191
    %v1193 = vadd.f32 %v1189, %v1192
    %vm1194 = vweird.f32 %v1188
    %vm1195 = vweird.f32 %v1189
    %vm1196 = vmor %vm1194, %vm1195
    %v1197 = vsel %vm1196, %v1189, %v1193
    %v1198 = vand.u32 2147483647, %v1188
    %vm1199 = vcmp.eq.f32.partialorder %v1198, 8.507059e+37
    %v1200 = vand.u32 %v1188, 2147483648
    %v1201 = vor.u32 1.1754944e-38, %v1200
    %v1202 = vsel %vm1199, %v1201, %v1197
    %v1203 = vmul.f32 1.0, %v1202
    %v1204 = vtanh.pop %v1164
    %v1205 = vxor.u32 %v1165, 2147483648
    %v1206 = vmul.f32 %v1205, 1.442695
    %v1207 = vpow.pop %v1206
    %v1208 = vadd.f32 %v1207, 1.0
    %v1209 = vrcp.pop %v1208
    %v1210 = vmul.f32 %v1208, %v1209
    %v1211 = vsub.f32 1.0, %v1210
    %v1212 = vmul.f32 %v1209, %v1211
    %v1213 = vadd.f32 %v1209, %v1212
    %vm1214 = vweird.f32 %v1208
    %vm1215 = vweird.f32 %v1209
    %vm1216 = vmor %vm1214, %vm1215
    %v1217 = vsel %vm1216, %v1209, %v1213
    %v1218 = vand.u32 2147483647, %v1208
    %vm1219 = vcmp.eq.f32.partialorder %v1218, 8.507059e+37
    %v1220 = vand.u32 %v1208, 2147483648
    %v1221 = vor.u32 1.1754944e-38, %v1220
    %v1222 = vsel %vm1219, %v1221, %v1217
    %v1223 = vmul.f32 1.0, %v1222
    %v1224 = vmul.f32 %v1203, %v1072
    %v1225 = vmul.f32 %v1184, %v1204
    %v1226 = vadd.f32 %v1224, %v1225
    %v1227 = vtanh.pop %v1226
    %v1228 = vmul.f32 %v1223, %v1227
    %s1229 = scalar_lea.vmem [#allocation4], 48
    %1230 = vst [vmem:[%s1229] sm:$0xff] %v1228
    %s1231 = scalar_lea.vmem [#allocation5], 224
    %v1232 = vld [vmem:[%s1231] sm:$0xff]
    %v1233 = vld [vmem:[%s1231 + $0x8] sm:$0xff]
    %v1234 = vld [vmem:[%s1231 + $0x10] sm:$0xff]
    %v1235 = vld [vmem:[%s1231 + $0x18] sm:$0xff]
    %1236 = vmatpush.msra.mxu0 %v149
    %1237 = vmatpush.msra.mxu0 %v145
    %1238 = vmatpush.msra.mxu0 %v141
    %1239 = vmatpush.msra.mxu0 %v137
    %1240 = vmatpush.msra.mxu0 %v133
    %1241 = vmatpush.msra.mxu0 %v129
    %1242 = vmatpush.msra.mxu0 %v125
    %1243 = vmatpush.msra.mxu0 %v121
    %1244 = vmatpush.msra.mxu0 %v117
    %1245 = vmatpush.msra.mxu0 %v113
    %1246 = vmatpush.msra.mxu0 %v109
    %1247 = vmatpush.msra.mxu0 %v105
    %1248 = vmatpush.msra.mxu0 %v101
    %1249 = vmatpush.msra.mxu0 %v97
    %1250 = vmatpush.msra.mxu0 %v93
    %1251 = vmatpush.msra.mxu0 %v89
    %1252 = vmatmul.f32.gmra.mxu0 %v1228
    %v1253 = vpop.f32.mrf.mxu0
    %v1254 = vadd.f32 0.0, %v1253
    %1255 = vdwg.mxu0
    %1256 = vmatpush.msra.mxu0 %v150
    %1257 = vmatpush.msra.mxu0 %v146
    %1258 = vmatpush.msra.mxu0 %v142
    %1259 = vmatpush.msra.mxu0 %v138
    %1260 = vmatpush.msra.mxu0 %v134
    %1261 = vmatpush.msra.mxu0 %v130
    %1262 = vmatpush.msra.mxu0 %v126
    %1263 = vmatpush.msra.mxu0 %v122
    %1264 = vmatpush.msra.mxu0 %v118
    %1265 = vmatpush.msra.mxu0 %v114
    %1266 = vmatpush.msra.mxu0 %v110
    %1267 = vmatpush.msra.mxu0 %v106
    %1268 = vmatpush.msra.mxu0 %v102
    %1269 = vmatpush.msra.mxu0 %v98
    %1270 = vmatpush.msra.mxu0 %v94
    %1271 = vmatpush.msra.mxu0 %v90
    %1272 = vmatmul.f32.gmra.mxu0 %v1228
    %v1273 = vpop.f32.mrf.mxu0
    %v1274 = vadd.f32 0.0, %v1273
    %1275 = vdwg.mxu0
    %1276 = vmatpush.msra.mxu0 %v151
    %1277 = vmatpush.msra.mxu0 %v147
    %1278 = vmatpush.msra.mxu0 %v143
    %1279 = vmatpush.msra.mxu0 %v139
    %1280 = vmatpush.msra.mxu0 %v135
    %1281 = vmatpush.msra.mxu0 %v131
    %1282 = vmatpush.msra.mxu0 %v127
    %1283 = vmatpush.msra.mxu0 %v123
    %1284 = vmatpush.msra.mxu0 %v119
    %1285 = vmatpush.msra.mxu0 %v115
    %1286 = vmatpush.msra.mxu0 %v111
    %1287 = vmatpush.msra.mxu0 %v107
    %1288 = vmatpush.msra.mxu0 %v103
    %1289 = vmatpush.msra.mxu0 %v99
    %1290 = vmatpush.msra.mxu0 %v95
    %1291 = vmatpush.msra.mxu0 %v91
    %1292 = vmatmul.f32.gmra.mxu0 %v1228
    %v1293 = vpop.f32.mrf.mxu0
    %v1294 = vadd.f32 0.0, %v1293
    %1295 = vdwg.mxu0
    %1296 = vmatpush.msra.mxu0 %v152
    %1297 = vmatpush.msra.mxu0 %v148
    %1298 = vmatpush.msra.mxu0 %v144
    %1299 = vmatpush.msra.mxu0 %v140
    %1300 = vmatpush.msra.mxu0 %v136
    %1301 = vmatpush.msra.mxu0 %v132
    %1302 = vmatpush.msra.mxu0 %v128
    %1303 = vmatpush.msra.mxu0 %v124
    %1304 = vmatpush.msra.mxu0 %v120
    %1305 = vmatpush.msra.mxu0 %v116
    %1306 = vmatpush.msra.mxu0 %v112
    %1307 = vmatpush.msra.mxu0 %v108
    %1308 = vmatpush.msra.mxu0 %v104
    %1309 = vmatpush.msra.mxu0 %v100
    %1310 = vmatpush.msra.mxu0 %v96
    %1311 = vmatpush.msra.mxu0 %v92
    %1312 = vmatmul.f32.gmra.mxu0 %v1228
    %v1313 = vpop.f32.mrf.mxu0
    %v1314 = vadd.f32 0.0, %v1313
    %1315 = vdwg.mxu0
    %v1316 = vadd.f32 %v1232, %v1254
    %v1317 = vadd.f32 %v1233, %v1274
    %v1318 = vadd.f32 %v1234, %v1294
    %v1319 = vadd.f32 %v1235, %v1314
    %v1320 = vxor.u32 %v1316, 2147483648
    %v1321 = vmul.f32 %v1320, 1.442695
    %v1322 = vpow.pop %v1321
    %v1323 = vadd.f32 %v1322, 1.0
    %v1324 = vrcp.pop %v1323
    %v1325 = vmul.f32 %v1323, %v1324
    %v1326 = vsub.f32 1.0, %v1325
    %v1327 = vmul.f32 %v1324, %v1326
    %v1328 = vadd.f32 %v1324, %v1327
    %vm1329 = vweird.f32 %v1323
    %vm1330 = vweird.f32 %v1324
    %vm1331 = vmor %vm1329, %vm1330
    %v1332 = vsel %vm1331, %v1324, %v1328
    %v1333 = vand.u32 2147483647, %v1323
    %vm1334 = vcmp.eq.f32.partialorder %v1333, 8.507059e+37
    %v1335 = vand.u32 %v1323, 2147483648
    %v1336 = vor.u32 1.1754944e-38, %v1335
    %v1337 = vsel %vm1334, %v1336, %v1332
    %v1338 = vmul.f32 1.0, %v1337
    %v1339 = vxor.u32 %v1317, 2147483648
    %v1340 = vmul.f32 %v1339, 1.442695
    %v1341 = vpow.pop %v1340
    %v1342 = vadd.f32 %v1341, 1.0
    %v1343 = vrcp.pop %v1342
    %v1344 = vmul.f32 %v1342, %v1343
    %v1345 = vsub.f32 1.0, %v1344
    %v1346 = vmul.f32 %v1343, %v1345
    %v1347 = vadd.f32 %v1343, %v1346
    %vm1348 = vweird.f32 %v1342
    %vm1349 = vweird.f32 %v1343
    %vm1350 = vmor %vm1348, %vm1349
    %v1351 = vsel %vm1350, %v1343, %v1347
    %v1352 = vand.u32 2147483647, %v1342
    %vm1353 = vcmp.eq.f32.partialorder %v1352, 8.507059e+37
    %v1354 = vand.u32 %v1342, 2147483648
    %v1355 = vor.u32 1.1754944e-38, %v1354
    %v1356 = vsel %vm1353, %v1355, %v1351
    %v1357 = vmul.f32 1.0, %v1356
    %v1358 = vtanh.pop %v1318
    %v1359 = vxor.u32 %v1319, 2147483648
    %v1360 = vmul.f32 %v1359, 1.442695
    %v1361 = vpow.pop %v1360
    %v1362 = vadd.f32 %v1361, 1.0
    %v1363 = vrcp.pop %v1362
    %v1364 = vmul.f32 %v1362, %v1363
    %v1365 = vsub.f32 1.0, %v1364
    %v1366 = vmul.f32 %v1363, %v1365
    %v1367 = vadd.f32 %v1363, %v1366
    %vm1368 = vweird.f32 %v1362
    %vm1369 = vweird.f32 %v1363
    %vm1370 = vmor %vm1368, %vm1369
    %v1371 = vsel %vm1370, %v1363, %v1367
    %v1372 = vand.u32 2147483647, %v1362
    %vm1373 = vcmp.eq.f32.partialorder %v1372, 8.507059e+37
    %v1374 = vand.u32 %v1362, 2147483648
    %v1375 = vor.u32 1.1754944e-38, %v1374
    %v1376 = vsel %vm1373, %v1375, %v1371
    %v1377 = vmul.f32 1.0, %v1376
    %v1378 = vmul.f32 %v1357, %v1226
    %v1379 = vmul.f32 %v1338, %v1358
    %v1380 = vadd.f32 %v1378, %v1379
    %v1381 = vtanh.pop %v1380
    %v1382 = vmul.f32 %v1377, %v1381
    %s1383 = scalar_lea.vmem [#allocation4], 56
    %1384 = vst [vmem:[%s1383] sm:$0xff] %v1382
    %1385 = vst [vmem:[#allocation2] sm:$0xff] %v1382
    %1386 = vst [vmem:[#allocation3] sm:$0xff] %v1380
    %v1387 = vld [vmem:[#allocation4] sm:$0xff]
    %v1389 = vrot.slane %v1387, 1
    %v1390 = vrot.slane %v1387, 2
    %v1391 = vrot.slane %v1387, 3
    %v1392 = vrot.slane %v1387, 4
    %v1393 = vrot.slane %v1387, 5
    %v1394 = vrot.slane %v1387, 6
    %v1395 = vrot.slane %v1387, 7
    %1403 = vst [vmem:[#allocation13] sm:$0x1] %v1387
    %1404 = vst [vmem:[#allocation13 + $0x8] sm:$0x1] %v1389
    %1405 = vst [vmem:[#allocation13 + $0x10] sm:$0x1] %v1390
    %1406 = vst [vmem:[#allocation13 + $0x18] sm:$0x1] %v1391
    %1407 = vst [vmem:[#allocation13 + $0x20] sm:$0x1] %v1392
    %1408 = vst [vmem:[#allocation13 + $0x28] sm:$0x1] %v1393
    %1409 = vst [vmem:[#allocation13 + $0x30] sm:$0x1] %v1394
    %1410 = vst [vmem:[#allocation13 + $0x38] sm:$0x1] %v1395
    %v1411 = vld [vmem:[%s459] sm:$0xff]
    %v1413 = vrot.slane %v1411, 1
    %v1414 = vrot.slane %v1411, 2
    %v1415 = vrot.slane %v1411, 3
    %v1416 = vrot.slane %v1411, 4
    %v1417 = vrot.slane %v1411, 5
    %v1418 = vrot.slane %v1411, 6
    %v1419 = vrot.slane %v1411, 7
    %1427 = vst [vmem:[#allocation13 + $0x1] sm:$0x1] %v1411
    %1428 = vst [vmem:[#allocation13 + $0x9] sm:$0x1] %v1413
    %1429 = vst [vmem:[#allocation13 + $0x11] sm:$0x1] %v1414
    %1430 = vst [vmem:[#allocation13 + $0x19] sm:$0x1] %v1415
    %1431 = vst [vmem:[#allocation13 + $0x21] sm:$0x1] %v1416
    %1432 = vst [vmem:[#allocation13 + $0x29] sm:$0x1] %v1417
    %1433 = vst [vmem:[#allocation13 + $0x31] sm:$0x1] %v1418
    %1434 = vst [vmem:[#allocation13 + $0x39] sm:$0x1] %v1419
    %v1435 = vld [vmem:[%s613] sm:$0xff]
    %v1437 = vrot.slane %v1435, 1
    %v1438 = vrot.slane %v1435, 2
    %v1439 = vrot.slane %v1435, 3
    %v1440 = vrot.slane %v1435, 4
    %v1441 = vrot.slane %v1435, 5
    %v1442 = vrot.slane %v1435, 6
    %v1443 = vrot.slane %v1435, 7
    %1451 = vst [vmem:[#allocation13 + $0x2] sm:$0x1] %v1435
    %1452 = vst [vmem:[#allocation13 + $0xa] sm:$0x1] %v1437
    %1453 = vst [vmem:[#allocation13 + $0x12] sm:$0x1] %v1438
    %1454 = vst [vmem:[#allocation13 + $0x1a] sm:$0x1] %v1439
    %1455 = vst [vmem:[#allocation13 + $0x22] sm:$0x1] %v1440
    %1456 = vst [vmem:[#allocation13 + $0x2a] sm:$0x1] %v1441
    %1457 = vst [vmem:[#allocation13 + $0x32] sm:$0x1] %v1442
    %1458 = vst [vmem:[#allocation13 + $0x3a] sm:$0x1] %v1443
    %v1459 = vld [vmem:[%s767] sm:$0xff]
    %v1461 = vrot.slane %v1459, 1
    %v1462 = vrot.slane %v1459, 2
    %v1463 = vrot.slane %v1459, 3
    %v1464 = vrot.slane %v1459, 4
    %v1465 = vrot.slane %v1459, 5
    %v1466 = vrot.slane %v1459, 6
    %v1467 = vrot.slane %v1459, 7
    %1475 = vst [vmem:[#allocation13 + $0x3] sm:$0x1] %v1459
    %1476 = vst [vmem:[#allocation13 + $0xb] sm:$0x1] %v1461
    %1477 = vst [vmem:[#allocation13 + $0x13] sm:$0x1] %v1462
    %1478 = vst [vmem:[#allocation13 + $0x1b] sm:$0x1] %v1463
    %1479 = vst [vmem:[#allocation13 + $0x23] sm:$0x1] %v1464
    %1480 = vst [vmem:[#allocation13 + $0x2b] sm:$0x1] %v1465
    %1481 = vst [vmem:[#allocation13 + $0x33] sm:$0x1] %v1466
    %1482 = vst [vmem:[#allocation13 + $0x3b] sm:$0x1] %v1467
    %v1483 = vld [vmem:[%s921] sm:$0xff]
    %v1485 = vrot.slane %v1483, 1
    %v1486 = vrot.slane %v1483, 2
    %v1487 = vrot.slane %v1483, 3
    %v1488 = vrot.slane %v1483, 4
    %v1489 = vrot.slane %v1483, 5
    %v1490 = vrot.slane %v1483, 6
    %v1491 = vrot.slane %v1483, 7
    %1499 = vst [vmem:[#allocation13 + $0x4] sm:$0x1] %v1483
    %1500 = vst [vmem:[#allocation13 + $0xc] sm:$0x1] %v1485
    %1501 = vst [vmem:[#allocation13 + $0x14] sm:$0x1] %v1486
    %1502 = vst [vmem:[#allocation13 + $0x1c] sm:$0x1] %v1487
    %1503 = vst [vmem:[#allocation13 + $0x24] sm:$0x1] %v1488
    %1504 = vst [vmem:[#allocation13 + $0x2c] sm:$0x1] %v1489
    %1505 = vst [vmem:[#allocation13 + $0x34] sm:$0x1] %v1490
    %1506 = vst [vmem:[#allocation13 + $0x3c] sm:$0x1] %v1491
    %v1507 = vld [vmem:[%s1075] sm:$0xff]
    %v1509 = vrot.slane %v1507, 1
    %v1510 = vrot.slane %v1507, 2
    %v1511 = vrot.slane %v1507, 3
    %v1512 = vrot.slane %v1507, 4
    %v1513 = vrot.slane %v1507, 5
    %v1514 = vrot.slane %v1507, 6
    %v1515 = vrot.slane %v1507, 7
    %1523 = vst [vmem:[#allocation13 + $0x5] sm:$0x1] %v1507
    %1524 = vst [vmem:[#allocation13 + $0xd] sm:$0x1] %v1509
    %1525 = vst [vmem:[#allocation13 + $0x15] sm:$0x1] %v1510
    %1526 = vst [vmem:[#allocation13 + $0x1d] sm:$0x1] %v1511
    %1527 = vst [vmem:[#allocation13 + $0x25] sm:$0x1] %v1512
    %1528 = vst [vmem:[#allocation13 + $0x2d] sm:$0x1] %v1513
    %1529 = vst [vmem:[#allocation13 + $0x35] sm:$0x1] %v1514
    %1530 = vst [vmem:[#allocation13 + $0x3d] sm:$0x1] %v1515
    %v1531 = vld [vmem:[%s1229] sm:$0xff]
    %v1533 = vrot.slane %v1531, 1
    %v1534 = vrot.slane %v1531, 2
    %v1535 = vrot.slane %v1531, 3
    %v1536 = vrot.slane %v1531, 4
    %v1537 = vrot.slane %v1531, 5
    %v1538 = vrot.slane %v1531, 6
    %v1539 = vrot.slane %v1531, 7
    %1547 = vst [vmem:[#allocation13 + $0x6] sm:$0x1] %v1531
    %1548 = vst [vmem:[#allocation13 + $0xe] sm:$0x1] %v1533
    %1549 = vst [vmem:[#allocation13 + $0x16] sm:$0x1] %v1534
    %1550 = vst [vmem:[#allocation13 + $0x1e] sm:$0x1] %v1535
    %1551 = vst [vmem:[#allocation13 + $0x26] sm:$0x1] %v1536
    %1552 = vst [vmem:[#allocation13 + $0x2e] sm:$0x1] %v1537
    %1553 = vst [vmem:[#allocation13 + $0x36] sm:$0x1] %v1538
    %1554 = vst [vmem:[#allocation13 + $0x3e] sm:$0x1] %v1539
    %v1555 = vld [vmem:[%s1383] sm:$0xff]
    %v1557 = vrot.slane %v1555, 1
    %v1558 = vrot.slane %v1555, 2
    %v1559 = vrot.slane %v1555, 3
    %v1560 = vrot.slane %v1555, 4
    %v1561 = vrot.slane %v1555, 5
    %v1562 = vrot.slane %v1555, 6
    %v1563 = vrot.slane %v1555, 7
    %1571 = vst [vmem:[#allocation13 + $0x7] sm:$0x1] %v1555
    %1572 = vst [vmem:[#allocation13 + $0xf] sm:$0x1] %v1557
    %1573 = vst [vmem:[#allocation13 + $0x17] sm:$0x1] %v1558
    %1574 = vst [vmem:[#allocation13 + $0x1f] sm:$0x1] %v1559
    %1575 = vst [vmem:[#allocation13 + $0x27] sm:$0x1] %v1560
    %1576 = vst [vmem:[#allocation13 + $0x2f] sm:$0x1] %v1561
    %1577 = vst [vmem:[#allocation13 + $0x37] sm:$0x1] %v1562
    %1578 = vst [vmem:[#allocation13 + $0x3f] sm:$0x1] %v1563
    // Predicated region
    $region38: #{tpu_custom_call.1} parent=1 // pred_check
      %p1579 = pneg %p81
    $region39: #{tpu_custom_call.1} parent=1 // pred_check_branch
      %1581 = sbr.rel (%p1579) target = $region41
    $region40: #{tpu_custom_call.1} parent=1 // pred_region
      %1582 = vst [vmem:[#allocation14] sm:$0xff] %v1382
      %1583 = vst [vmem:[#allocation16] sm:$0xff] %v1380
    $region41: #{tpu_custom_call.1} parent=1 // pred_fallthru
      _
    // Predicated region
    $region42: #{tpu_custom_call.1} parent=1 // pred_check
      _
    $region43: #{tpu_custom_call.1} parent=1 // pred_check_branch
      %1585 = sbr.rel (0) target = $region45
    $region44: #{tpu_custom_call.1} parent=1 // pred_region
      %1587 = vsyncadd [#allocation7], 0
      %s1588 = sshll.u32 [#allocation13], 4
      %s1589 = int_to_ptr.vmem [resolvable:$true] %s1588
      %s1590 = sshll.u32 %s4, 4
      %s1591 = int_to_ptr.hbm [resolvable:$true] %s1590
      %1596 = dma.vmem_to_hbm [thread:$0]  %s1589, 1024, %s1591, [#allocation7], 128, 128, 8
    $region45: #{tpu_custom_call.1} parent=1 // pred_fallthru
      _
    // Predicated region
    $region46: #{tpu_custom_call.1} parent=1 // pred_check
      _
    $region47: #{tpu_custom_call.1} parent=1 // pred_check_branch
      %1598 = sbr.rel (0) target = $region49
    $region48: #{tpu_custom_call.1} parent=1 // pred_region
      %1600 = vsyncadd [#allocation15], 0
      %s1602 = sshll.u32 [#allocation14], 4
      %s1603 = int_to_ptr.vmem [resolvable:$true] %s1602
      %s1604 = sshll.u32 %s5, 4
      %s1605 = int_to_ptr.hbm [resolvable:$true] %s1604
      %1607 = dma.vmem_to_hbm [thread:$0]  %s1603, 128, %s1605, [#allocation15]
    $region49: #{tpu_custom_call.1} parent=1 // pred_fallthru
      _
    // Predicated region
    $region50: #{tpu_custom_call.1} parent=1 // pred_check
      _
    $region51: #{tpu_custom_call.1} parent=1 // pred_check_branch
      %1609 = sbr.rel (0) target = $region53
    $region52: #{tpu_custom_call.1} parent=1 // pred_region
      %1611 = vsyncadd [#allocation15], 0
      %s1613 = sshll.u32 [#allocation16], 4
      %s1614 = int_to_ptr.vmem [resolvable:$true] %s1613
      %s1615 = sshll.u32 %s6, 4
      %s1616 = int_to_ptr.hbm [resolvable:$true] %s1615
      %1618 = dma.vmem_to_hbm [thread:$0]  %s1614, 128, %s1616, [#allocation15]
    $region53: #{tpu_custom_call.1} parent=1 // pred_fallthru
      _
    // Predicated region
    $region54: #{tpu_custom_call.1} parent=1 // pred_check
      _
    $region55: #{tpu_custom_call.1} parent=1 // pred_check_branch
      %1620 = sbr.rel (0) target = $region57
    $region56: #{tpu_custom_call.1} parent=1 // pred_region
      %1622 = dma.done [#allocation7], 1024
    $region57: #{tpu_custom_call.1} parent=1 // pred_fallthru
      _
    // Predicated region
    $region58: #{tpu_custom_call.1} parent=1 // pred_check
      _
    $region59: #{tpu_custom_call.1} parent=1 // pred_check_branch
      %1624 = sbr.rel (0) target = $region61
    $region60: #{tpu_custom_call.1} parent=1 // pred_region
      %1626 = dma.done [#allocation15], 128
    $region61: #{tpu_custom_call.1} parent=1 // pred_fallthru
      _
    // Predicated region
    $region62: #{tpu_custom_call.1} parent=1 // pred_check
      _
    $region63: #{tpu_custom_call.1} parent=1 // pred_check_branch
      %1628 = sbr.rel (0) target = $region65
    $region64: #{tpu_custom_call.1} parent=1 // pred_region
      %1630 = dma.done [#allocation15], 128
    $region65: #{tpu_custom_call.1} parent=1 // pred_fallthru
      _
    %1631 = vsyncpa [#allocation6], 1
    %1632 = vsyncpa [#allocation9], 1
    %1633 = vsyncpa [#allocation12], 1
    %1634 = vsyncpa [#allocation7], 1
    %1635 = vsyncpa [#allocation15], 1

</llo_original>
